<compile_context>
chip_gen: v7x
topology: tpu7x:2x2x1
jax: 0.10.0
libtpu: 0.0.40
codegen_flags: <defaults>
</compile_context>

<pallas_src>
import jax
import jax.numpy as jnp
from jax.experimental import pallas as pl
from jax.experimental.pallas import tpu as pltpu

BN_EPS = 1e-5
LANE = 128
NEG_INF = -1e30


def _round_up(n, m):
    return ((n + m - 1) // m) * m


def encoder_kernel(x_ref, w1_ref, b1_ref, w2_ref, b2_ref, w3_ref, b3_ref, o_ref):
    # x arrives in its HBM dtype (f32 or bf16); cast in-kernel (VPU, hidden under
    # the MXU) instead of in the wrapper (which would cost an extra HBM pass).
    x = x_ref[...].astype(jnp.bfloat16)

    # ---- Linear + (folded) BatchNorm + ReLU   (Dropout = identity in eval mode) ----
    h = jnp.dot(x, w1_ref[...], preferred_element_type=jnp.float32) + b1_ref[...]
    h = jnp.maximum(h, 0.0).astype(jnp.bfloat16)

    # ---- Linear + (folded) BatchNorm + ReLU   (Dropout = identity in eval mode) ----
    h = jnp.dot(h, w2_ref[...], preferred_element_type=jnp.float32) + b2_ref[...]
    h = jnp.maximum(h, 0.0).astype(jnp.bfloat16)

    # ---- Linear (N padded to 128 lanes) + Softmax over real classes ----
    logits = jnp.dot(h, w3_ref[...], preferred_element_type=jnp.float32) + b3_ref[...]
    mx = jnp.max(logits, axis=1, keepdims=True)
    e = jnp.exp(logits - mx)                 # padded lanes: f32 bias=-1e30 -> exp == 0
    denom = jnp.sum(e, axis=1, keepdims=True)
    # Exact divide: the softmax epilogue rides free under the MXU, and exact
    # normalization keeps each row summing to 1 for downstream consumers.
    o_ref[...] = (e / denom).astype(o_ref.dtype)


def _fold_bn(w, b, gamma, beta, mean, var):
    """Fold eval-mode BatchNorm1d into the preceding Linear. w:(in,out), rest:(1,out)."""
    scale = gamma * jax.lax.rsqrt(var + BN_EPS)           # (1, out)
    w_f = w * scale                                       # per-output-column scale
    b_f = (b - mean) * scale + beta
    return w_f, b_f


def prepare_params(p, *, pad_k_to=LANE):
    """BN-fold, pad K of the first matmul and the final output width to lane-dense
    multiples of 128, cast weights to bf16 (biases stay f32)."""
    w1, b1 = _fold_bn(p["w1"], p["b1"], p["g1"], p["be1"], p["m1"], p["v1"])
    w2, b2 = _fold_bn(p["w2"], p["b2"], p["g2"], p["be2"], p["m2"], p["v2"])
    w3, b3 = p["w3"], p["b3"]

    # Pad w1's K dim (e.g. 3000 -> 3072) so the dominant matmul has clean (16,128)
    # bf16 tiling; padded rows are zero so padded x columns contribute nothing.
    d_in = w1.shape[0]
    k_pad = _round_up(d_in, pad_k_to)
    if k_pad != d_in:
        w1 = jnp.zeros((k_pad, w1.shape[1]), w1.dtype).at[:d_in, :].set(w1)

    # Pad the class dim to a lane-dense multiple of 128 so stores are unmasked
    # and the MXU gets a legal N.  b3 MUST stay f32 so exp(-1e30) == 0 exactly.
    c = w3.shape[1]
    c_pad = max(LANE, _round_up(c, LANE))
    w3p = jnp.zeros((w3.shape[0], c_pad), jnp.float32).at[:, :c].set(w3)
    b3p = jnp.full((1, c_pad), NEG_INF, jnp.float32).at[:, :c].set(b3)

    return dict(
        w1=w1.astype(jnp.bfloat16), b1=b1.astype(jnp.float32),
        w2=w2.astype(jnp.bfloat16), b2=b2.astype(jnp.float32),
        w3=w3p.astype(jnp.bfloat16), b3=b3p,                    # b3 kept f32
        n_classes=c, d_in=d_in,
    )


def encoder_forward(x, kp, *, batch_tile=512, out_dtype=jnp.float32,
                    vmem_limit_bytes=None):
    """x: (B, D_in) float32 or bfloat16. kp: dict from prepare_params."""
    B, D_in = x.shape
    K, H = kp["w1"].shape
    C = kp["n_classes"]
    Cp = kp["w3"].shape[1]
    assert D_in <= K, "x has more features than the prepared w1"

    if D_in != K:
        # Fallback only: for best perf the producer of x should emit the K-padded
        # (ideally bf16) activations directly so this extra HBM pass never happens.
        # TODO(synk): push this padding into the upstream op for the real pipeline.
        x = jnp.pad(x, ((0, 0), (0, K - D_in)))

    # Batch tile: big enough to amortize the ~0.35us/step overhead, small enough
    # for v7x's 64 MiB/TC, and >=2 grid tiles (when B allows) so both v7x
    # TensorCores get work under dimension_semantics=("parallel",).
    tb = min(batch_tile, _round_up(B, 8))
    if pl.cdiv(B, tb) < 2 and B > 2 * 128:
        tb = _round_up(pl.cdiv(B, 2), 8)
    n_tiles = pl.cdiv(B, tb)        # ragged tail: Pallas masks the partial block

    out_itemsize = jnp.dtype(out_dtype).itemsize
    w_bytes = (K * H + H * H + H * Cp) * 2 + (H + H + Cp) * 4        # bf16 W + f32 b
    tile_bytes = tb * (K * x.dtype.itemsize + Cp * out_itemsize) * 2  # double-buffered
    interm_bytes = tb * (K * 2 + H * 6 + Cp * 8)                      # in-kernel temps
    if vmem_limit_bytes is None:
        # Real footprint + ~50% headroom, never "all of VMEM" (v7x: 64 MiB/TC).
        vmem_limit_bytes = int(min(
            max(1.5 * (2 * w_bytes + tile_bytes + interm_bytes) + (4 << 20), 32 << 20),
            100 << 20))

    flops = 2 * B * (K * H + H * H + H * Cp)
    bytes_accessed = B * K * x.dtype.itemsize + w_bytes + B * Cp * out_itemsize

    def run(single_buffer_weights):
        if single_buffer_weights:
            # Weights/biases are grid-invariant (constant index_map): loaded once,
            # so the default double buffer is pure VMEM waste (matters on v7x).
            ws = lambda shape: pl.BlockSpec(shape, lambda i: (0, 0),
                                            pipeline_mode=pl.Buffered(1))
        else:
            ws = lambda shape: pl.BlockSpec(shape, lambda i: (0, 0))

        in_specs = [
            pl.BlockSpec((tb, K), lambda i: (i, 0)),   # x, tiled & pipelined over batch
            ws((K, H)), ws((1, H)),
            ws((H, H)), ws((1, H)),
            ws((H, Cp)), ws((1, Cp)),
        ]
        out_spec = pl.BlockSpec((tb, Cp), lambda i: (i, 0))   # lane-dense (Cp % 128 == 0)

        return pl.pallas_call(
            encoder_kernel,
            out_shape=jax.ShapeDtypeStruct((B, Cp), out_dtype),
            grid_spec=pltpu.PrefetchScalarGridSpec(
                num_scalar_prefetch=0,
                grid=(n_tiles,),
                in_specs=in_specs,
                out_specs=out_spec,
            ),
            compiler_params=pltpu.CompilerParams(
                dimension_semantics=("parallel",),
                vmem_limit_bytes=vmem_limit_bytes,
            ),
            cost_estimate=pl.CostEstimate(
                flops=flops,
                transcendentals=B * Cp,
                bytes_accessed=bytes_accessed,
            ),
        )(x, kp["w1"], kp["b1"], kp["w2"], kp["b2"], kp["w3"], kp["b3"])

    try:
        out = jax.block_until_ready(run(single_buffer_weights=True))
    except Exception:
        # Graceful fallback if this jax/TPU build rejects single-buffered specs.
        out = run(single_buffer_weights=False)

    return out[:, :C]


def init_params(key, d_in, hidden, n_classes):
    """nn.Linear-style init (U(-1/sqrt(fan_in), 1/sqrt(fan_in))) plus non-trivial
    BatchNorm1d parameters / running stats so the BN fold is genuinely exercised."""
    ks = jax.random.split(key, 14)

    def linear(kw, kb, fan_in, fan_out):
        bound = 1.0 / jnp.sqrt(fan_in)
        w = jax.random.uniform(kw, (fan_in, fan_out), jnp.float32, -bound, bound)
        b = jax.random.uniform(kb, (1, fan_out), jnp.float32, -bound, bound)
        return w, b

    def bn(kg, kb, km, kv, h):
        g = 1.0 + 0.1 * jax.random.normal(kg, (1, h), jnp.float32)
        be = 0.1 * jax.random.normal(kb, (1, h), jnp.float32)
        m = 0.1 * jax.random.normal(km, (1, h), jnp.float32)
        v = jax.random.uniform(kv, (1, h), jnp.float32, 0.5, 1.5)
        return g, be, m, v

    w1, b1 = linear(ks[0], ks[1], d_in, hidden)
    w2, b2 = linear(ks[2], ks[3], hidden, hidden)
    w3, b3 = linear(ks[4], ks[5], hidden, n_classes)
    g1, be1, m1, v1 = bn(ks[6], ks[7], ks[8], ks[9], hidden)
    g2, be2, m2, v2 = bn(ks[10], ks[11], ks[12], ks[13], hidden)

    return dict(
        w1=w1, b1=b1, g1=g1, be1=be1, m1=m1, v1=v1,
        w2=w2, b2=b2, g2=g2, be2=be2, m2=m2, v2=v2,
        w3=w3, b3=b3,
    )


def encoder_reference(x, p):
    """Pure-JAX f32 reference with the original (un-folded) eval-mode semantics."""
    h = x @ p["w1"] + p["b1"]
    h = (h - p["m1"]) * jax.lax.rsqrt(p["v1"] + BN_EPS) * p["g1"] + p["be1"]
    h = jnp.maximum(h, 0.0)
    h = h @ p["w2"] + p["b2"]
    h = (h - p["m2"]) * jax.lax.rsqrt(p["v2"] + BN_EPS) * p["g2"] + p["be2"]
    h = jnp.maximum(h, 0.0)
    logits = h @ p["w3"] + p["b3"]
    return jax.nn.softmax(logits, axis=1)


if __name__ == "__main__":
    # Small synthetic stand-in for layers = [3000, 512, n_celltypes].
    # B=500 deliberately not a multiple of the batch tile (exercises the ragged
    # last block that Pallas masks — no wrapper-side jnp.pad anymore).
    B, D_IN, HIDDEN, N_CLASSES = 500, 256, 128, 8

    key = jax.random.PRNGKey(0)
    kx, kp = jax.random.split(key)
    x = jax.random.normal(kx, (B, D_IN), jnp.float32)

    raw_params = init_params(kp, D_IN, HIDDEN, N_CLASSES)
    kernel_params = prepare_params(raw_params)

    # Small tile -> 4 grid steps (pipelining + megacore sharding + ragged tail).
    out = encoder_forward(x, kernel_params, batch_tile=128)
    out = jax.block_until_ready(out)

    # Default tile path (auto-shrunk so there are >=2 tiles) must agree.
    out2 = jax.block_until_ready(encoder_forward(x, kernel_params))

    ref = encoder_reference(x, raw_params)
    assert out.shape == (B, N_CLASSES)
    # bf16 matmuls + BN fold -> loose tolerance vs the f32 reference.
    assert jnp.allclose(out, ref, atol=2e-2, rtol=0.0), float(jnp.max(jnp.abs(out - ref)))
    assert jnp.allclose(out, out2, atol=1e-5, rtol=0.0)
    assert jnp.allclose(jnp.sum(out, axis=1), 1.0, atol=1e-3)   # exact divide in-kernel
    assert bool(jnp.all(out >= 0.0))

    print("KERNEL_OK")
</pallas_src>

<mosaic_0001>
module attributes {stable_mosaic.version = 11 : i64} {
  func.func @encoder_kernel(%arg0: i32, %arg1: memref<128x256xf32, #tpu.memory_space<vmem>>, %arg2: memref<256x128xbf16, #tpu.memory_space<vmem>>, %arg3: memref<1x128xf32, #tpu.memory_space<vmem>>, %arg4: memref<128x128xbf16, #tpu.memory_space<vmem>>, %arg5: memref<1x128xf32, #tpu.memory_space<vmem>>, %arg6: memref<128x128xbf16, #tpu.memory_space<vmem>>, %arg7: memref<1x128xf32, #tpu.memory_space<vmem>>, %arg8: memref<128x128xf32, #tpu.memory_space<vmem>>) attributes {dimension_semantics = [#tpu.dimension_semantics<parallel>], iteration_bounds = array<i64: 4>, scalar_prefetch = 0 : i64, scratch_operands = 0 : i64, tpu.core_type = #tpu.core_type<tc>, window_params = [{transform_indices = @transform_0, window_bounds = array<i64: 128, 256>}, {pipeline_mode = #tpu.pipeline_mode<synchronous>, transform_indices = @transform_1, window_bounds = array<i64: 256, 128>}, {pipeline_mode = #tpu.pipeline_mode<synchronous>, transform_indices = @transform_2, window_bounds = array<i64: 1, 128>}, {pipeline_mode = #tpu.pipeline_mode<synchronous>, transform_indices = @transform_3, window_bounds = array<i64: 128, 128>}, {pipeline_mode = #tpu.pipeline_mode<synchronous>, transform_indices = @transform_4, window_bounds = array<i64: 1, 128>}, {pipeline_mode = #tpu.pipeline_mode<synchronous>, transform_indices = @transform_5, window_bounds = array<i64: 128, 128>}, {pipeline_mode = #tpu.pipeline_mode<synchronous>, transform_indices = @transform_6, window_bounds = array<i64: 1, 128>}, {transform_indices = @transform_7, window_bounds = array<i64: 128, 128>}]} {
    %c0 = arith.constant 0 : index
    %c0_0 = arith.constant 0 : index
    %0 = vector.load %arg1[%c0, %c0_0] : memref<128x256xf32, #tpu.memory_space<vmem>>, vector<128x256xf32>
    %1 = arith.truncf %0 : vector<128x256xf32> to vector<128x256xbf16>
    %c0_1 = arith.constant 0 : index
    %c0_2 = arith.constant 0 : index
    %2 = vector.load %arg2[%c0_1, %c0_2] : memref<256x128xbf16, #tpu.memory_space<vmem>>, vector<256x128xbf16>
    %cst = arith.constant dense<0.000000e+00> : vector<128x128xf32>
    %3 = tpu.matmul %1, %2, %cst {dimension_numbers = #tpu.dot_dimension_numbers<[1], [0], [0], [1], [0, 0, 1, 1], [], []>} : vector<128x256xbf16>, vector<256x128xbf16>, vector<128x128xf32> -> vector<128x128xf32>
    %c0_3 = arith.constant 0 : index
    %c0_4 = arith.constant 0 : index
    %4 = vector.load %arg3[%c0_3, %c0_4] : memref<1x128xf32, #tpu.memory_space<vmem>>, vector<1x128xf32>
    %5 = vector.broadcast %4 : vector<1x128xf32> to vector<128x128xf32>
    %6 = arith.addf %3, %5 : vector<128x128xf32>
    %cst_5 = arith.constant 0.000000e+00 : f32
    %7 = vector.broadcast %cst_5 : f32 to vector<128x128xf32>
    %8 = arith.maximumf %6, %7 : vector<128x128xf32>
    %9 = arith.truncf %8 : vector<128x128xf32> to vector<128x128xbf16>
    %c0_6 = arith.constant 0 : index
    %c0_7 = arith.constant 0 : index
    %10 = vector.load %arg4[%c0_6, %c0_7] : memref<128x128xbf16, #tpu.memory_space<vmem>>, vector<128x128xbf16>
    %cst_8 = arith.constant dense<0.000000e+00> : vector<128x128xf32>
    %11 = tpu.matmul %9, %10, %cst_8 {dimension_numbers = #tpu.dot_dimension_numbers<[1], [0], [0], [1], [0, 0, 1, 1], [], []>} : vector<128x128xbf16>, vector<128x128xbf16>, vector<128x128xf32> -> vector<128x128xf32>
    %c0_9 = arith.constant 0 : index
    %c0_10 = arith.constant 0 : index
    %12 = vector.load %arg5[%c0_9, %c0_10] : memref<1x128xf32, #tpu.memory_space<vmem>>, vector<1x128xf32>
    %13 = vector.broadcast %12 : vector<1x128xf32> to vector<128x128xf32>
    %14 = arith.addf %11, %13 : vector<128x128xf32>
    %cst_11 = arith.constant 0.000000e+00 : f32
    %15 = vector.broadcast %cst_11 : f32 to vector<128x128xf32>
    %16 = arith.maximumf %14, %15 : vector<128x128xf32>
    %17 = arith.truncf %16 : vector<128x128xf32> to vector<128x128xbf16>
    %c0_12 = arith.constant 0 : index
    %c0_13 = arith.constant 0 : index
    %18 = vector.load %arg6[%c0_12, %c0_13] : memref<128x128xbf16, #tpu.memory_space<vmem>>, vector<128x128xbf16>
    %cst_14 = arith.constant dense<0.000000e+00> : vector<128x128xf32>
    %19 = tpu.matmul %17, %18, %cst_14 {dimension_numbers = #tpu.dot_dimension_numbers<[1], [0], [0], [1], [0, 0, 1, 1], [], []>} : vector<128x128xbf16>, vector<128x128xbf16>, vector<128x128xf32> -> vector<128x128xf32>
    %c0_15 = arith.constant 0 : index
    %c0_16 = arith.constant 0 : index
    %20 = vector.load %arg7[%c0_15, %c0_16] : memref<1x128xf32, #tpu.memory_space<vmem>>, vector<1x128xf32>
    %21 = vector.broadcast %20 : vector<1x128xf32> to vector<128x128xf32>
    %22 = arith.addf %19, %21 : vector<128x128xf32>
    %cst_17 = arith.constant dense<0xFF800000> : vector<128xf32>
    %23 = vector.multi_reduction <maximumf>, %22, %cst_17 [1] : vector<128x128xf32> to vector<128xf32>
    %24 = vector.shape_cast %23 : vector<128xf32> to vector<128x1xf32>
    %25 = vector.broadcast %24 : vector<128x1xf32> to vector<128x128xf32>
    %26 = arith.subf %22, %25 : vector<128x128xf32>
    %27 = math.exp %26 : vector<128x128xf32>
    %cst_18 = arith.constant dense<0.000000e+00> : vector<128xf32>
    %28 = vector.multi_reduction <add>, %27, %cst_18 [1] : vector<128x128xf32> to vector<128xf32>
    %29 = vector.shape_cast %28 : vector<128xf32> to vector<128x1xf32>
    %30 = vector.broadcast %29 : vector<128x1xf32> to vector<128x128xf32>
    %31 = arith.divf %27, %30 : vector<128x128xf32>
    %c0_19 = arith.constant 0 : index
    %c0_20 = arith.constant 0 : index
    %32 = vector.load %arg8[%c0_19, %c0_20] : memref<128x128xf32, #tpu.memory_space<vmem>>, vector<128x128xf32>
    tpu.vector_store %arg8[%c0_19, %c0_20], %31 {strides = array<i32>} : memref<128x128xf32, #tpu.memory_space<vmem>>, vector<128x128xf32>,
    return
  }
  func.func @transform_0(%arg0: i32) -> (i32, i32) {
    %c0_i32 = arith.constant 0 : i32
    %c0_i32_0 = arith.constant 0 : i32
    return %arg0, %c0_i32 : i32, i32
  }
  func.func @transform_1(%arg0: i32) -> (i32, i32) {
    %c0_i32 = arith.constant 0 : i32
    %c0_i32_0 = arith.constant 0 : i32
    %c0_i32_1 = arith.constant 0 : i32
    return %c0_i32, %c0_i32_0 : i32, i32
  }
  func.func @transform_2(%arg0: i32) -> (i32, i32) {
    %c0_i32 = arith.constant 0 : i32
    %c0_i32_0 = arith.constant 0 : i32
    %c0_i32_1 = arith.constant 0 : i32
    return %c0_i32, %c0_i32_0 : i32, i32
  }
  func.func @transform_3(%arg0: i32) -> (i32, i32) {
    %c0_i32 = arith.constant 0 : i32
    %c0_i32_0 = arith.constant 0 : i32
    %c0_i32_1 = arith.constant 0 : i32
    return %c0_i32, %c0_i32_0 : i32, i32
  }
  func.func @transform_4(%arg0: i32) -> (i32, i32) {
    %c0_i32 = arith.constant 0 : i32
    %c0_i32_0 = arith.constant 0 : i32
    %c0_i32_1 = arith.constant 0 : i32
    return %c0_i32, %c0_i32_0 : i32, i32
  }
  func.func @transform_5(%arg0: i32) -> (i32, i32) {
    %c0_i32 = arith.constant 0 : i32
    %c0_i32_0 = arith.constant 0 : i32
    %c0_i32_1 = arith.constant 0 : i32
    return %c0_i32, %c0_i32_0 : i32, i32
  }
  func.func @transform_6(%arg0: i32) -> (i32, i32) {
    %c0_i32 = arith.constant 0 : i32
    %c0_i32_0 = arith.constant 0 : i32
    %c0_i32_1 = arith.constant 0 : i32
    return %c0_i32, %c0_i32_0 : i32, i32
  }
  func.func @transform_7(%arg0: i32) -> (i32, i32) {
    %c0_i32 = arith.constant 0 : i32
    %c0_i32_0 = arith.constant 0 : i32
    return %arg0, %c0_i32 : i32, i32
  }
}

module attributes {stable_mosaic.version = 11 : i64} {
  func.func @encoder_kernel(%arg0: i32, %arg1: memref<128x256xf32, #tpu.memory_space<vmem>>, %arg2: memref<256x128xbf16, #tpu.memory_space<vmem>>, %arg3: memref<1x128xf32, #tpu.memory_space<vmem>>, %arg4: memref<128x128xbf16, #tpu.memory_space<vmem>>, %arg5: memref<1x128xf32, #tpu.memory_space<vmem>>, %arg6: memref<128x128xbf16, #tpu.memory_space<vmem>>, %arg7: memref<1x128xf32, #tpu.memory_space<vmem>>, %arg8: memref<128x128xf32, #tpu.memory_space<vmem>>) attributes {dimension_semantics = [#tpu.dimension_semantics<parallel>], iteration_bounds = array<i64: 4>, scalar_prefetch = 0 : i64, scratch_operands = 0 : i64, tpu.core_type = #tpu.core_type<tc>, window_params = [{transform_indices = @transform_0, window_bounds = array<i64: 128, 256>}, {pipeline_mode = #tpu.pipeline_mode<synchronous>, transform_indices = @transform_1, window_bounds = array<i64: 256, 128>}, {pipeline_mode = #tpu.pipeline_mode<synchronous>, transform_indices = @transform_2, window_bounds = array<i64: 1, 128>}, {pipeline_mode = #tpu.pipeline_mode<synchronous>, transform_indices = @transform_3, window_bounds = array<i64: 128, 128>}, {pipeline_mode = #tpu.pipeline_mode<synchronous>, transform_indices = @transform_4, window_bounds = array<i64: 1, 128>}, {pipeline_mode = #tpu.pipeline_mode<synchronous>, transform_indices = @transform_5, window_bounds = array<i64: 128, 128>}, {pipeline_mode = #tpu.pipeline_mode<synchronous>, transform_indices = @transform_6, window_bounds = array<i64: 1, 128>}, {transform_indices = @transform_7, window_bounds = array<i64: 128, 128>}]} {
    %c0 = arith.constant 0 : index
    %c0_0 = arith.constant 0 : index
    %0 = vector.load %arg1[%c0, %c0_0] : memref<128x256xf32, #tpu.memory_space<vmem>>, vector<128x256xf32>
    %1 = arith.truncf %0 : vector<128x256xf32> to vector<128x256xbf16>
    %c0_1 = arith.constant 0 : index
    %c0_2 = arith.constant 0 : index
    %2 = vector.load %arg2[%c0_1, %c0_2] : memref<256x128xbf16, #tpu.memory_space<vmem>>, vector<256x128xbf16>
    %cst = arith.constant dense<0.000000e+00> : vector<128x128xf32>
    %3 = tpu.matmul %1, %2, %cst {dimension_numbers = #tpu.dot_dimension_numbers<[1], [0], [0], [1], [0, 0, 1, 1], [], []>} : vector<128x256xbf16>, vector<256x128xbf16>, vector<128x128xf32> -> vector<128x128xf32>
    %c0_3 = arith.constant 0 : index
    %c0_4 = arith.constant 0 : index
    %4 = vector.load %arg3[%c0_3, %c0_4] : memref<1x128xf32, #tpu.memory_space<vmem>>, vector<1x128xf32>
    %5 = vector.broadcast %4 : vector<1x128xf32> to vector<128x128xf32>
    %6 = arith.addf %3, %5 : vector<128x128xf32>
    %cst_5 = arith.constant 0.000000e+00 : f32
    %7 = vector.broadcast %cst_5 : f32 to vector<128x128xf32>
    %8 = arith.maximumf %6, %7 : vector<128x128xf32>
    %9 = arith.truncf %8 : vector<128x128xf32> to vector<128x128xbf16>
    %c0_6 = arith.constant 0 : index
    %c0_7 = arith.constant 0 : index
    %10 = vector.load %arg4[%c0_6, %c0_7] : memref<128x128xbf16, #tpu.memory_space<vmem>>, vector<128x128xbf16>
    %cst_8 = arith.constant dense<0.000000e+00> : vector<128x128xf32>
    %11 = tpu.matmul %9, %10, %cst_8 {dimension_numbers = #tpu.dot_dimension_numbers<[1], [0], [0], [1], [0, 0, 1, 1], [], []>} : vector<128x128xbf16>, vector<128x128xbf16>, vector<128x128xf32> -> vector<128x128xf32>
    %c0_9 = arith.constant 0 : index
    %c0_10 = arith.constant 0 : index
    %12 = vector.load %arg5[%c0_9, %c0_10] : memref<1x128xf32, #tpu.memory_space<vmem>>, vector<1x128xf32>
    %13 = vector.broadcast %12 : vector<1x128xf32> to vector<128x128xf32>
    %14 = arith.addf %11, %13 : vector<128x128xf32>
    %cst_11 = arith.constant 0.000000e+00 : f32
    %15 = vector.broadcast %cst_11 : f32 to vector<128x128xf32>
    %16 = arith.maximumf %14, %15 : vector<128x128xf32>
    %17 = arith.truncf %16 : vector<128x128xf32> to vector<128x128xbf16>
    %c0_12 = arith.constant 0 : index
    %c0_13 = arith.constant 0 : index
    %18 = vector.load %arg6[%c0_12, %c0_13] : memref<128x128xbf16, #tpu.memory_space<vmem>>, vector<128x128xbf16>
    %cst_14 = arith.constant dense<0.000000e+00> : vector<128x128xf32>
    %19 = tpu.matmul %17, %18, %cst_14 {dimension_numbers = #tpu.dot_dimension_numbers<[1], [0], [0], [1], [0, 0, 1, 1], [], []>} : vector<128x128xbf16>, vector<128x128xbf16>, vector<128x128xf32> -> vector<128x128xf32>
    %c0_15 = arith.constant 0 : index
    %c0_16 = arith.constant 0 : index
    %20 = vector.load %arg7[%c0_15, %c0_16] : memref<1x128xf32, #tpu.memory_space<vmem>>, vector<1x128xf32>
    %21 = vector.broadcast %20 : vector<1x128xf32> to vector<128x128xf32>
    %22 = arith.addf %19, %21 : vector<128x128xf32>
    %cst_17 = arith.constant dense<0xFF800000> : vector<128xf32>
    %23 = vector.multi_reduction <maximumf>, %22, %cst_17 [1] : vector<128x128xf32> to vector<128xf32>
    %24 = vector.shape_cast %23 : vector<128xf32> to vector<128x1xf32>
    %25 = vector.broadcast %24 : vector<128x1xf32> to vector<128x128xf32>
    %26 = arith.subf %22, %25 : vector<128x128xf32>
    %27 = math.exp %26 : vector<128x128xf32>
    %cst_18 = arith.constant dense<0.000000e+00> : vector<128xf32>
    %28 = vector.multi_reduction <add>, %27, %cst_18 [1] : vector<128x128xf32> to vector<128xf32>
    %29 = vector.shape_cast %28 : vector<128xf32> to vector<128x1xf32>
    %30 = vector.broadcast %29 : vector<128x1xf32> to vector<128x128xf32>
    %31 = arith.divf %27, %30 : vector<128x128xf32>
    %c0_19 = arith.constant 0 : index
    %c0_20 = arith.constant 0 : index
    %32 = vector.load %arg8[%c0_19, %c0_20] : memref<128x128xf32, #tpu.memory_space<vmem>>, vector<128x128xf32>
    tpu.vector_store %arg8[%c0_19, %c0_20], %31 {strides = array<i32>} : memref<128x128xf32, #tpu.memory_space<vmem>>, vector<128x128xf32>,
    return
  }
  func.func @transform_0(%arg0: i32) -> (i32, i32) {
    %c0_i32 = arith.constant 0 : i32
    %c0_i32_0 = arith.constant 0 : i32
    return %arg0, %c0_i32 : i32, i32
  }
  func.func @transform_1(%arg0: i32) -> (i32, i32) {
    %c0_i32 = arith.constant 0 : i32
    %c0_i32_0 = arith.constant 0 : i32
    %c0_i32_1 = arith.constant 0 : i32
    return %c0_i32, %c0_i32_0 : i32, i32
  }
  func.func @transform_2(%arg0: i32) -> (i32, i32) {
    %c0_i32 = arith.constant 0 : i32
    %c0_i32_0 = arith.constant 0 : i32
    %c0_i32_1 = arith.constant 0 : i32
    return %c0_i32, %c0_i32_0 : i32, i32
  }
  func.func @transform_3(%arg0: i32) -> (i32, i32) {
    %c0_i32 = arith.constant 0 : i32
    %c0_i32_0 = arith.constant 0 : i32
    %c0_i32_1 = arith.constant 0 : i32
    return %c0_i32, %c0_i32_0 : i32, i32
  }
  func.func @transform_4(%arg0: i32) -> (i32, i32) {
    %c0_i32 = arith.constant 0 : i32
    %c0_i32_0 = arith.constant 0 : i32
    %c0_i32_1 = arith.constant 0 : i32
    return %c0_i32, %c0_i32_0 : i32, i32
  }
  func.func @transform_5(%arg0: i32) -> (i32, i32) {
    %c0_i32 = arith.constant 0 : i32
    %c0_i32_0 = arith.constant 0 : i32
    %c0_i32_1 = arith.constant 0 : i32
    return %c0_i32, %c0_i32_0 : i32, i32
  }
  func.func @transform_6(%arg0: i32) -> (i32, i32) {
    %c0_i32 = arith.constant 0 : i32
    %c0_i32_0 = arith.constant 0 : i32
    %c0_i32_1 = arith.constant 0 : i32
    return %c0_i32, %c0_i32_0 : i32, i32
  }
  func.func @transform_7(%arg0: i32) -> (i32, i32) {
    %c0_i32 = arith.constant 0 : i32
    %c0_i32_0 = arith.constant 0 : i32
    return %arg0, %c0_i32 : i32, i32
  }
}

</mosaic_0001>

<llo_original>
// kernel: tpu_custom_call.1
$region0: #{tpu_custom_call.1}
  #allocation0 [shape = 'u32[]', space=smem, size = 0x4, offset = 0x4, fixed_abs, tag = 'smem constant byte address 0x4 - core index']
  #allocation1 [shape = 'u32[144,128]{1,0:T(1,128)}', space=vmem, size = 0x12000, scoped, tag = 'internal scratch']
  %s0 = inlined_call_operand.hbm [shape: f32[500,256], index: 0, kind: input, shape index: {}]
  %s1 = inlined_call_operand.hbm [shape: bf16[256,128], index: 1, kind: input, shape index: {}]
  %s2 = inlined_call_operand.vmem [shape: f32[1,128], index: 2, kind: input, shape index: {}]
  %s3 = inlined_call_operand.hbm [shape: bf16[128,128], index: 3, kind: input, shape index: {}]
  %s4 = inlined_call_operand.vmem [shape: f32[1,128], index: 4, kind: input, shape index: {}]
  %s5 = inlined_call_operand.hbm [shape: bf16[128,128], index: 5, kind: input, shape index: {}]
  %s6 = inlined_call_operand.vmem [shape: f32[1,128], index: 6, kind: input, shape index: {}]
  %s7 = inlined_call_operand.hbm [shape: f32[500,128], index: 7, kind: output, shape index: {}]
  %s8 = sld [smem:[#allocation0]]
  $region77: #{tpu_custom_call.1} parent=0
    _
  %s10 = ssub.s32 1, %s8
  %s11 = scalar_select 0, %s10, %s8
  $region1: #{tpu_custom_call.1} parent=0
    #allocation2 [shape = 'u8[262144]{0}', space=vmem, size = 0x40000, scoped, tag = 'input window, operand 0']
    #allocation3 [shape = 's32[2]{0}', space=sflag, size = 0x8, scoped, tag = 'scoped memory for tpu_custom_call.1']
    #allocation4 [shape = 's32[2]{0}', space=sflag, size = 0x8, scoped, tag = 'scoped memory for tpu_custom_call.1']
    #allocation5 [shape = 'u8[65536]{0}', space=vmem, size = 0x10000, scoped, tag = 'input window, operand 1, single buffered']
    #allocation6 [shape = 's32[1]{0}', space=sflag, size = 0x4, scoped, tag = 'scoped memory for tpu_custom_call.1']
    #allocation7 [shape = 'u8[32768]{0}', space=vmem, size = 0x8000, scoped, tag = 'input window, operand 3, single buffered']
    #allocation8 [shape = 'u8[32768]{0}', space=vmem, size = 0x8000, scoped, tag = 'input window, operand 5, single buffered']
    #allocation9 [shape = 's32[1]{0}', space=sflag, size = 0x4, scoped, tag = 'scoped memory for tpu_custom_call.1']
    #allocation10 [shape = 'u8[131072]{0}', space=vmem, size = 0x20000, scoped, tag = 'output window, operand 0']
    %12 = vsyncpa [#allocation3], 0
    %s13 = scalar_lea.sflag [#allocation3], 1
    %14 = vsyncpa %s13, 0
    %15 = vsyncpa [#allocation6], 0
    %16 = vsyncpa [#allocation9], 0
    %17 = vsyncpa [#allocation4], 0
    %s18 = scalar_lea.sflag [#allocation4], 1
    %19 = vsyncpa %s18, 0
    loop: start=0, step=1, limit=6
    $region2: #{tpu_custom_call.1} parent=1 // loop_pre_header
      _
    $region3: #{tpu_custom_call.1} parent=1 // loop_header
      %s21 = sphi 0, %s25
      %p22 = scmp.ge.s32.totalorder %s21, 6
      %s31 = sphi 0, %s33
      %s34 = sphi 0, %s31
      %s35 = sphi 0, %s34
      %s51 = sphi 0, %s35
      %s55 = sphi 0, %s55
      %s57 = sphi 0, %s55
      %s58 = sphi 0, %s57
      %s72 = sphi 0, %s58
      %s76 = sphi 0, %s76
      %s78 = sphi 0, %s76
      %s79 = sphi 0, %s78
      %s93 = sphi 0, %s79
      %s97 = sphi 0, %s97
      %s99 = sphi 0, %s97
      %s100 = sphi 0, %s99
      %s114 = sphi 0, %s100
      %s118 = sphi 0, %s118
      %s120 = sphi 0, %s118
      %s121 = sphi 0, %s120
      %s135 = sphi 0, %s121
      %s139 = sphi 0, %s139
      %s141 = sphi 0, %s139
      %s142 = sphi 0, %s141
      %s156 = sphi 0, %s142
      %s160 = sphi 0, %s160
      %s162 = sphi 0, %s160
      %s163 = sphi 0, %s162
      %s177 = sphi 0, %s163
      %s183 = sphi 0, %s185
      %s186 = sphi 0, %s183
      %s187 = sphi 0, %s186
      %s203 = sphi 0, %s187
    $region4: #{tpu_custom_call.1} parent=1 // loop_header_branch
      %24 = sbr.rel (%p22) target = $region8
    $region5: #{tpu_custom_call.1} parent=1 // loop_body
      %s26 = ssub.s32 %s21, 1
      %s27 = ssub.s32 %s21, 2
      %s28 = sadd.s32 %s21, 1
      %s29 = ssub.s32 %s21, %s28
      %p30 = scmp.eq.s32.totalorder %s29, 0
      %s32 = sadd.s32 %s31, 1
      %s33 = scalar_select %p30, %s31, %s32
      %p36 = pneg %p30
      %p37 = scmp.eq.s32.totalorder %s21, 3
      %p38 = por %p36, %p37
      %p39 = scmp.ne.s32.totalorder %s31, %s34
      %p40 = scmp.eq.s32.totalorder %s21, 0
      %p41 = por %p39, %p40
      %p42 = scmp.ne.s32.totalorder %s31, %s34
      %p43 = scmp.eq.s32.totalorder %s26, 3
      %p44 = por %p42, %p43
      %p45 = scmp.ne.s32.totalorder %s34, %s35
      %p46 = scmp.eq.s32.totalorder %s26, 0
      %p47 = por %p45, %p46
      %p48 = scmp.ne.s32.totalorder %s34, %s35
      %p49 = scmp.eq.s32.totalorder %s27, 3
      %p50 = por %p48, %p49
      %p52 = scmp.ne.s32.totalorder %s35, %s51
      %p53 = scmp.eq.s32.totalorder %s27, 0
      %p54 = por %p52, %p53
      %s56 = sadd.s32 %s55, 1
      %p59 = scmp.eq.s32.totalorder %s21, 3
      %p60 = scmp.ne.s32.totalorder %s55, %s57
      %p61 = scmp.eq.s32.totalorder %s21, 0
      %p62 = por %p60, %p61
      %p63 = scmp.ne.s32.totalorder %s55, %s57
      %p64 = scmp.eq.s32.totalorder %s26, 3
      %p65 = por %p63, %p64
      %p66 = scmp.ne.s32.totalorder %s57, %s58
      %p67 = scmp.eq.s32.totalorder %s26, 0
      %p68 = por %p66, %p67
      %p69 = scmp.ne.s32.totalorder %s57, %s58
      %p70 = scmp.eq.s32.totalorder %s27, 3
      %p71 = por %p69, %p70
      %p73 = scmp.ne.s32.totalorder %s58, %s72
      %p74 = scmp.eq.s32.totalorder %s27, 0
      %p75 = por %p73, %p74
      %s77 = sadd.s32 %s76, 1
      %p80 = scmp.eq.s32.totalorder %s21, 3
      %p81 = scmp.ne.s32.totalorder %s76, %s78
      %p82 = scmp.eq.s32.totalorder %s21, 0
      %p83 = por %p81, %p82
      %p84 = scmp.ne.s32.totalorder %s76, %s78
      %p85 = scmp.eq.s32.totalorder %s26, 3
      %p86 = por %p84, %p85
      %p87 = scmp.ne.s32.totalorder %s78, %s79
      %p88 = scmp.eq.s32.totalorder %s26, 0
      %p89 = por %p87, %p88
      %p90 = scmp.ne.s32.totalorder %s78, %s79
      %p91 = scmp.eq.s32.totalorder %s27, 3
      %p92 = por %p90, %p91
      %p94 = scmp.ne.s32.totalorder %s79, %s93
      %p95 = scmp.eq.s32.totalorder %s27, 0
      %p96 = por %p94, %p95
      %s98 = sadd.s32 %s97, 1
      %p101 = scmp.eq.s32.totalorder %s21, 3
      %p102 = scmp.ne.s32.totalorder %s97, %s99
      %p103 = scmp.eq.s32.totalorder %s21, 0
      %p104 = por %p102, %p103
      %p105 = scmp.ne.s32.totalorder %s97, %s99
      %p106 = scmp.eq.s32.totalorder %s26, 3
      %p107 = por %p105, %p106
      %p108 = scmp.ne.s32.totalorder %s99, %s100
      %p109 = scmp.eq.s32.totalorder %s26, 0
      %p110 = por %p108, %p109
      %p111 = scmp.ne.s32.totalorder %s99, %s100
      %p112 = scmp.eq.s32.totalorder %s27, 3
      %p113 = por %p111, %p112
      %p115 = scmp.ne.s32.totalorder %s100, %s114
      %p116 = scmp.eq.s32.totalorder %s27, 0
      %p117 = por %p115, %p116
      %s119 = sadd.s32 %s118, 1
      %p122 = scmp.eq.s32.totalorder %s21, 3
      %p123 = scmp.ne.s32.totalorder %s118, %s120
      %p124 = scmp.eq.s32.totalorder %s21, 0
      %p125 = por %p123, %p124
      %p126 = scmp.ne.s32.totalorder %s118, %s120
      %p127 = scmp.eq.s32.totalorder %s26, 3
      %p128 = por %p126, %p127
      %p129 = scmp.ne.s32.totalorder %s120, %s121
      %p130 = scmp.eq.s32.totalorder %s26, 0
      %p131 = por %p129, %p130
      %p132 = scmp.ne.s32.totalorder %s120, %s121
      %p133 = scmp.eq.s32.totalorder %s27, 3
      %p134 = por %p132, %p133
      %p136 = scmp.ne.s32.totalorder %s121, %s135
      %p137 = scmp.eq.s32.totalorder %s27, 0
      %p138 = por %p136, %p137
      %s140 = sadd.s32 %s139, 1
      %p143 = scmp.eq.s32.totalorder %s21, 3
      %p144 = scmp.ne.s32.totalorder %s139, %s141
      %p145 = scmp.eq.s32.totalorder %s21, 0
      %p146 = por %p144, %p145
      %p147 = scmp.ne.s32.totalorder %s139, %s141
      %p148 = scmp.eq.s32.totalorder %s26, 3
      %p149 = por %p147, %p148
      %p150 = scmp.ne.s32.totalorder %s141, %s142
      %p151 = scmp.eq.s32.totalorder %s26, 0
      %p152 = por %p150, %p151
      %p153 = scmp.ne.s32.totalorder %s141, %s142
      %p154 = scmp.eq.s32.totalorder %s27, 3
      %p155 = por %p153, %p154
      %p157 = scmp.ne.s32.totalorder %s142, %s156
      %p158 = scmp.eq.s32.totalorder %s27, 0
      %p159 = por %p157, %p158
      %s161 = sadd.s32 %s160, 1
      %p164 = scmp.eq.s32.totalorder %s21, 3
      %p165 = scmp.ne.s32.totalorder %s160, %s162
      %p166 = scmp.eq.s32.totalorder %s21, 0
      %p167 = por %p165, %p166
      %p168 = scmp.ne.s32.totalorder %s160, %s162
      %p169 = scmp.eq.s32.totalorder %s26, 3
      %p170 = por %p168, %p169
      %p171 = scmp.ne.s32.totalorder %s162, %s163
      %p172 = scmp.eq.s32.totalorder %s26, 0
      %p173 = por %p171, %p172
      %p174 = scmp.ne.s32.totalorder %s162, %s163
      %p175 = scmp.eq.s32.totalorder %s27, 3
      %p176 = por %p174, %p175
      %p178 = scmp.ne.s32.totalorder %s163, %s177
      %p179 = scmp.eq.s32.totalorder %s27, 0
      %p180 = por %p178, %p179
      %s181 = ssub.s32 %s21, %s28
      %p182 = scmp.eq.s32.totalorder %s181, 0
      %s184 = sadd.s32 %s183, 1
      %s185 = scalar_select %p182, %s183, %s184
      %p188 = pneg %p182
      %p189 = scmp.eq.s32.totalorder %s21, 3
      %p190 = por %p188, %p189
      %p191 = scmp.ne.s32.totalorder %s183, %s186
      %p192 = scmp.eq.s32.totalorder %s21, 0
      %p193 = por %p191, %p192
      %p194 = scmp.ne.s32.totalorder %s183, %s186
      %p195 = scmp.eq.s32.totalorder %s26, 3
      %p196 = por %p194, %p195
      %p197 = scmp.ne.s32.totalorder %s186, %s187
      %p198 = scmp.eq.s32.totalorder %s26, 0
      %p199 = por %p197, %p198
      %p200 = scmp.ne.s32.totalorder %s186, %s187
      %p201 = scmp.eq.s32.totalorder %s27, 3
      %p202 = por %p200, %p201
      %p204 = scmp.ne.s32.totalorder %s187, %s203
      %p205 = scmp.eq.s32.totalorder %s27, 0
      %p206 = por %p204, %p205
      %p207 = scmp.le.s32.totalorder 1, %s21
      %p208 = scmp.lt.s32.totalorder %s21, 5
      %p209 = pnand %p207, %p208
      %p210 = pneg %p209
      // Predicated region
      $region9: #{tpu_custom_call.1} parent=5 // pred_check
        _
      $region10: #{tpu_custom_call.1} parent=5 // pred_check_branch
        %212 = sbr.rel (%p209) target = $region12
      $region11: #{tpu_custom_call.1} parent=5 // pred_region
        %s213 = ssub.s32 %s21, 1
        // Predicated region
        $region13: #{tpu_custom_call.1} parent=11 // pred_check
          %p214 = pneg %p68
        $region14: #{tpu_custom_call.1} parent=11 // pred_check_branch
          %216 = sbr.rel (%p214) target = $region16
        $region15: #{tpu_custom_call.1} parent=11 // pred_region
          %s218 = ssub.s32 2048, 2048
          %219 = vsyncadd [#allocation6], %s218
          %s220 = sshll.u32 [#allocation5], 4
          %s221 = int_to_ptr.vmem [resolvable:$true] %s220
          %226 = dma.hbm_to_vmem [thread:$0]  %s1, 2048, %s221, [#allocation6], 64, 64, 4
        $region16: #{tpu_custom_call.1} parent=11 // pred_fallthru
          _
        // Predicated region
        $region17: #{tpu_custom_call.1} parent=11 // pred_check
          %p227 = pneg %p89
        $region18: #{tpu_custom_call.1} parent=11 // pred_check_branch
          %229 = sbr.rel (%p227) target = $region20
        $region19: #{tpu_custom_call.1} parent=11 // pred_region
          _
        $region20: #{tpu_custom_call.1} parent=11 // pred_fallthru
          _
        // Predicated region
        $region21: #{tpu_custom_call.1} parent=11 // pred_check
          %p230 = pneg %p110
        $region22: #{tpu_custom_call.1} parent=11 // pred_check_branch
          %232 = sbr.rel (%p230) target = $region24
        $region23: #{tpu_custom_call.1} parent=11 // pred_region
          %s234 = ssub.s32 1024, 1024
          %235 = vsyncadd [#allocation6], %s234
          %s236 = sshll.u32 [#allocation7], 4
          %s237 = int_to_ptr.vmem [resolvable:$true] %s236
          %242 = dma.hbm_to_vmem [thread:$0]  %s3, 1024, %s237, [#allocation6], 64, 64, 4
        $region24: #{tpu_custom_call.1} parent=11 // pred_fallthru
          _
        // Predicated region
        $region25: #{tpu_custom_call.1} parent=11 // pred_check
          %p243 = pneg %p131
        $region26: #{tpu_custom_call.1} parent=11 // pred_check_branch
          %245 = sbr.rel (%p243) target = $region28
        $region27: #{tpu_custom_call.1} parent=11 // pred_region
          _
        $region28: #{tpu_custom_call.1} parent=11 // pred_fallthru
          _
        // Predicated region
        $region29: #{tpu_custom_call.1} parent=11 // pred_check
          %p246 = pneg %p152
        $region30: #{tpu_custom_call.1} parent=11 // pred_check_branch
          %248 = sbr.rel (%p246) target = $region32
        $region31: #{tpu_custom_call.1} parent=11 // pred_region
          %s250 = ssub.s32 1024, 1024
          %251 = vsyncadd [#allocation9], %s250
          %s252 = sshll.u32 [#allocation8], 4
          %s253 = int_to_ptr.vmem [resolvable:$true] %s252
          %258 = dma.hbm_to_vmem [thread:$0]  %s5, 1024, %s253, [#allocation9], 64, 64, 4
        $region32: #{tpu_custom_call.1} parent=11 // pred_fallthru
          _
        // Predicated region
        $region33: #{tpu_custom_call.1} parent=11 // pred_check
          %p259 = pneg %p173
        $region34: #{tpu_custom_call.1} parent=11 // pred_check_branch
          %261 = sbr.rel (%p259) target = $region36
        $region35: #{tpu_custom_call.1} parent=11 // pred_region
          _
        $region36: #{tpu_custom_call.1} parent=11 // pred_fallthru
          _
      $region12: #{tpu_custom_call.1} parent=5 // pred_fallthru
        _
      %p262 = scmp.lt.s32.totalorder %s21, 4
      // Predicated region
      $region37: #{tpu_custom_call.1} parent=5 // pred_check
        %p263 = pneg %p262
      $region38: #{tpu_custom_call.1} parent=5 // pred_check_branch
        %265 = sbr.rel (%p263) target = $region40
      $region39: #{tpu_custom_call.1} parent=5 // pred_region
        // Predicated region
        $region41: #{tpu_custom_call.1} parent=39 // pred_check
          %p266 = pneg %p41
        $region42: #{tpu_custom_call.1} parent=39 // pred_check_branch
          %268 = sbr.rel (%p266) target = $region44
        $region43: #{tpu_custom_call.1} parent=39 // pred_region
          %s269 = sand.u32 %s31, 1
          %s270 = scalar_lea.sflag [#allocation3], %s269
          %s271 = sand.u32 %s31, 1
          %s272 = smul.addr %s271, 256
          %s273 = scalar_lea.vmem [#allocation2], %s272
          %s274 = smul.u32 16, %s21
          %s275 = ssub.s32 63, %s274
          %p276 = scmp.lt.s32.totalorder %s275, 16
          %s277 = scalar_select %p276, %s275, 16
          %s278 = smul.u32 128, %s277
          %s279 = smul.u32 %s278, 2
          %s281 = ssub.s32 4096, %s279
          %282 = vsyncadd %s270, %s281
          %p283 = scmp.ne.s32.totalorder 0, %s279
          %s284 = smul.addr %s274, 2
          %s285 = smul.addr %s284, 128
          %s286 = scalar_lea.hbm %s0, %s285
          %s287 = smul.u32 16, %s277
          %s288 = sshll.u32 %s273, 4
          %s289 = int_to_ptr.vmem [resolvable:$true] %s288
          %s290 = sshll.u32 %s287, 4
          %294 = dma.hbm_to_vmem [thread:$0]  (%p283), %s286, %s290, %s289, %s270, 256, 256, 16
        $region44: #{tpu_custom_call.1} parent=39 // pred_fallthru
          _
      $region40: #{tpu_custom_call.1} parent=5 // pred_fallthru
        _
      %p295 = scmp.le.s32.totalorder 1, %s21
      %p296 = scmp.lt.s32.totalorder %s21, 5
      %p297 = pnand %p295, %p296
      %p298 = pneg %p297
      // Predicated region
      $region45: #{tpu_custom_call.1} parent=5 // pred_check
        _
      $region46: #{tpu_custom_call.1} parent=5 // pred_check_branch
        %300 = sbr.rel (%p297) target = $region48
      $region47: #{tpu_custom_call.1} parent=5 // pred_region
        %s301 = ssub.s32 %s21, 1
        %s302 = sand.u32 %s34, 1
        %s303 = scalar_lea.sflag [#allocation3], %s302
        %s304 = sand.u32 %s34, 1
        %s305 = smul.addr %s304, 256
        %s306 = scalar_lea.vmem [#allocation2], %s305
        // Predicated region
        $region49: #{tpu_custom_call.1} parent=47 // pred_check
          %p307 = pneg %p47
        $region50: #{tpu_custom_call.1} parent=47 // pred_check_branch
          %309 = sbr.rel (%p307) target = $region52
        $region51: #{tpu_custom_call.1} parent=47 // pred_region
          %310 = dma.done %s303, 4096
        $region52: #{tpu_custom_call.1} parent=47 // pred_fallthru
          _
        // Predicated region
        $region53: #{tpu_custom_call.1} parent=47 // pred_check
          %p311 = pneg %p68
        $region54: #{tpu_custom_call.1} parent=47 // pred_check_branch
          %313 = sbr.rel (%p311) target = $region56
        $region55: #{tpu_custom_call.1} parent=47 // pred_region
          %314 = dma.done [#allocation6], 2048
        $region56: #{tpu_custom_call.1} parent=47 // pred_fallthru
          _
        // Predicated region
        $region57: #{tpu_custom_call.1} parent=47 // pred_check
          %p315 = pneg %p110
        $region58: #{tpu_custom_call.1} parent=47 // pred_check_branch
          %317 = sbr.rel (%p315) target = $region60
        $region59: #{tpu_custom_call.1} parent=47 // pred_region
          %318 = dma.done [#allocation6], 1024
        $region60: #{tpu_custom_call.1} parent=47 // pred_fallthru
          _
        // Predicated region
        $region61: #{tpu_custom_call.1} parent=47 // pred_check
          %p319 = pneg %p152
        $region62: #{tpu_custom_call.1} parent=47 // pred_check_branch
          %321 = sbr.rel (%p319) target = $region64
        $region63: #{tpu_custom_call.1} parent=47 // pred_region
          %322 = dma.done [#allocation9], 1024
        $region64: #{tpu_custom_call.1} parent=47 // pred_fallthru
          _
        %s323 = sand.u32 %s34, 1
        %s324 = scalar_lea.sflag [#allocation3], %s323
        %s325 = sand.u32 %s34, 1
        %s326 = smul.addr %s325, 256
        %s327 = scalar_lea.vmem [#allocation2], %s326
        %p328 = pneg %p47
        %p329 = pneg %p44
        %p330 = pneg %p68
        %p331 = pneg %p65
        %p332 = pneg %p89
        %p333 = pneg %p86
        %p334 = pneg %p110
        %p335 = pneg %p107
        %p336 = pneg %p131
        %p337 = pneg %p128
        %p338 = pneg %p152
        %p339 = pneg %p149
        %p340 = pneg %p173
        %p341 = pneg %p170
        %p342 = pneg %p199
        %p343 = pneg %p196
        %s344 = sand.u32 %s186, 1
        %s345 = scalar_lea.sflag [#allocation4], %s344
        %s346 = sand.u32 %s186, 1
        %s347 = smul.addr %s346, 128
        %s348 = scalar_lea.vmem [#allocation10], %s347
        %s349 = smul.u32 16, %s26
        %s350 = ssub.s32 63, %s349
        %p351 = scmp.lt.s32.totalorder %s350, 16
        %s352 = scalar_select %p351, %s350, 16
        %s353 = smul.u32 128, %s352
        %s354 = smul.u32 %s353, 2
        %s355 = smul.u32 16, %s26
        %s356 = ssub.s32 63, %s355
        %p357 = scmp.lt.s32.totalorder %s356, 16
        %s358 = scalar_select %p357, %s356, 16
        %s359 = smul.u32 128, %s358
        %v361 = vld [vmem:[%s306] sm:$0xff]
        %v362 = vld [vmem:[%s306 + $0x8] sm:$0xff]
        %v363 = vld [vmem:[%s306 + $0x10] sm:$0xff]
        %v364 = vld [vmem:[%s306 + $0x18] sm:$0xff]
        %v365 = vld [vmem:[%s306 + $0x20] sm:$0xff]
        %v366 = vld [vmem:[%s306 + $0x28] sm:$0xff]
        %v367 = vld [vmem:[%s306 + $0x30] sm:$0xff]
        %v368 = vld [vmem:[%s306 + $0x38] sm:$0xff]
        %v369 = vld [vmem:[%s306 + $0x40] sm:$0xff]
        %v370 = vld [vmem:[%s306 + $0x48] sm:$0xff]
        %v371 = vld [vmem:[%s306 + $0x50] sm:$0xff]
        %v372 = vld [vmem:[%s306 + $0x58] sm:$0xff]
        %v373 = vld [vmem:[%s306 + $0x60] sm:$0xff]
        %v374 = vld [vmem:[%s306 + $0x68] sm:$0xff]
        %v375 = vld [vmem:[%s306 + $0x70] sm:$0xff]
        %v376 = vld [vmem:[%s306 + $0x78] sm:$0xff]
        %v377 = vld [vmem:[%s306 + $0x80] sm:$0xff]
        %v378 = vld [vmem:[%s306 + $0x88] sm:$0xff]
        %v379 = vld [vmem:[%s306 + $0x90] sm:$0xff]
        %v380 = vld [vmem:[%s306 + $0x98] sm:$0xff]
        %v381 = vld [vmem:[%s306 + $0xa0] sm:$0xff]
        %v382 = vld [vmem:[%s306 + $0xa8] sm:$0xff]
        %v383 = vld [vmem:[%s306 + $0xb0] sm:$0xff]
        %v384 = vld [vmem:[%s306 + $0xb8] sm:$0xff]
        %v385 = vld [vmem:[%s306 + $0xc0] sm:$0xff]
        %v386 = vld [vmem:[%s306 + $0xc8] sm:$0xff]
        %v387 = vld [vmem:[%s306 + $0xd0] sm:$0xff]
        %v388 = vld [vmem:[%s306 + $0xd8] sm:$0xff]
        %v389 = vld [vmem:[%s306 + $0xe0] sm:$0xff]
        %v390 = vld [vmem:[%s306 + $0xe8] sm:$0xff]
        %v391 = vld [vmem:[%s306 + $0xf0] sm:$0xff]
        %v392 = vld [vmem:[%s306 + $0xf8] sm:$0xff]
        %v393 = vpack.c.bf16 %v363, %v361
        %v394 = vpack.c.bf16 %v364, %v362
        %v395 = vpack.c.bf16 %v367, %v365
        %v396 = vpack.c.bf16 %v368, %v366
        %v397 = vpack.c.bf16 %v371, %v369
        %v398 = vpack.c.bf16 %v372, %v370
        %v399 = vpack.c.bf16 %v375, %v373
        %v400 = vpack.c.bf16 %v376, %v374
        %v401 = vpack.c.bf16 %v379, %v377
        %v402 = vpack.c.bf16 %v380, %v378
        %v403 = vpack.c.bf16 %v383, %v381
        %v404 = vpack.c.bf16 %v384, %v382
        %v405 = vpack.c.bf16 %v387, %v385
        %v406 = vpack.c.bf16 %v388, %v386
        %v407 = vpack.c.bf16 %v391, %v389
        %v408 = vpack.c.bf16 %v392, %v390
        %v409 = vld [vmem:[#allocation5] sm:$0xf]
        %v410 = vld [vmem:[#allocation5 + $0x4] sm:$0xf]
        %v411 = vld [vmem:[#allocation5 + $0x8] sm:$0xf]
        %v412 = vld [vmem:[#allocation5 + $0xc] sm:$0xf]
        %v413 = vld [vmem:[#allocation5 + $0x10] sm:$0xf]
        %v414 = vld [vmem:[#allocation5 + $0x14] sm:$0xf]
        %v415 = vld [vmem:[#allocation5 + $0x18] sm:$0xf]
        %v416 = vld [vmem:[#allocation5 + $0x1c] sm:$0xf]
        %v417 = vld [vmem:[#allocation5 + $0x20] sm:$0xf]
        %v418 = vld [vmem:[#allocation5 + $0x24] sm:$0xf]
        %v419 = vld [vmem:[#allocation5 + $0x28] sm:$0xf]
        %v420 = vld [vmem:[#allocation5 + $0x2c] sm:$0xf]
        %v421 = vld [vmem:[#allocation5 + $0x30] sm:$0xf]
        %v422 = vld [vmem:[#allocation5 + $0x34] sm:$0xf]
        %v423 = vld [vmem:[#allocation5 + $0x38] sm:$0xf]
        %v424 = vld [vmem:[#allocation5 + $0x3c] sm:$0xf]
        %v425 = vld [vmem:[#allocation5 + $0x40] sm:$0xf]
        %v426 = vld [vmem:[#allocation5 + $0x44] sm:$0xf]
        %v427 = vld [vmem:[#allocation5 + $0x48] sm:$0xf]
        %v428 = vld [vmem:[#allocation5 + $0x4c] sm:$0xf]
        %v429 = vld [vmem:[#allocation5 + $0x50] sm:$0xf]
        %v430 = vld [vmem:[#allocation5 + $0x54] sm:$0xf]
        %v431 = vld [vmem:[#allocation5 + $0x58] sm:$0xf]
        %v432 = vld [vmem:[#allocation5 + $0x5c] sm:$0xf]
        %v433 = vld [vmem:[#allocation5 + $0x60] sm:$0xf]
        %v434 = vld [vmem:[#allocation5 + $0x64] sm:$0xf]
        %v435 = vld [vmem:[#allocation5 + $0x68] sm:$0xf]
        %v436 = vld [vmem:[#allocation5 + $0x6c] sm:$0xf]
        %v437 = vld [vmem:[#allocation5 + $0x70] sm:$0xf]
        %v438 = vld [vmem:[#allocation5 + $0x74] sm:$0xf]
        %v439 = vld [vmem:[#allocation5 + $0x78] sm:$0xf]
        %v440 = vld [vmem:[#allocation5 + $0x7c] sm:$0xf]
        %v441 = vld [vmem:[%s2] sm:$0x1]
        %v443 = vlaneseq
        %v444 = vshrl.u32 %v443, 7
        %v445 = vsub.s32 0, %v444
        %v446 = vrot.slane %v441, %v445
        %v480 = vunpack.c.l.b16 %v409
        %v481 = vunpack.c.l.b16 %v410
        %v482 = vunpack.c.l.b16 %v411
        %v483 = vunpack.c.l.b16 %v412
        %v484 = vunpack.c.l.b16 %v413
        %v485 = vunpack.c.l.b16 %v414
        %v486 = vunpack.c.l.b16 %v415
        %v487 = vunpack.c.l.b16 %v416
        %v488 = vunpack.c.l.b16 %v417
        %v489 = vunpack.c.l.b16 %v418
        %v490 = vunpack.c.l.b16 %v419
        %v491 = vunpack.c.l.b16 %v420
        %v492 = vunpack.c.l.b16 %v421
        %v493 = vunpack.c.l.b16 %v422
        %v494 = vunpack.c.l.b16 %v423
        %v495 = vunpack.c.l.b16 %v424
        %v496 = vunpack.c.l.b16 %v425
        %v497 = vunpack.c.l.b16 %v426
        %v498 = vunpack.c.l.b16 %v427
        %v499 = vunpack.c.l.b16 %v428
        %v500 = vunpack.c.l.b16 %v429
        %v501 = vunpack.c.l.b16 %v430
        %v502 = vunpack.c.l.b16 %v431
        %v503 = vunpack.c.l.b16 %v432
        %v504 = vunpack.c.l.b16 %v433
        %v505 = vunpack.c.l.b16 %v434
        %v506 = vunpack.c.l.b16 %v435
        %v507 = vunpack.c.l.b16 %v436
        %v508 = vunpack.c.l.b16 %v437
        %v509 = vunpack.c.l.b16 %v438
        %v510 = vunpack.c.l.b16 %v439
        %v511 = vunpack.c.l.b16 %v440
        %v512 = vpack.c.b16 %v481, %v480
        %v513 = vpack.c.b16 %v483, %v482
        %v514 = vpack.c.b16 %v485, %v484
        %v515 = vpack.c.b16 %v487, %v486
        %v516 = vpack.c.b16 %v489, %v488
        %v517 = vpack.c.b16 %v491, %v490
        %v518 = vpack.c.b16 %v493, %v492
        %v519 = vpack.c.b16 %v495, %v494
        %v520 = vpack.c.b16 %v497, %v496
        %v521 = vpack.c.b16 %v499, %v498
        %v522 = vpack.c.b16 %v501, %v500
        %v523 = vpack.c.b16 %v503, %v502
        %v524 = vpack.c.b16 %v505, %v504
        %v525 = vpack.c.b16 %v507, %v506
        %v526 = vpack.c.b16 %v509, %v508
        %v527 = vpack.c.b16 %v511, %v510
        %544 = vmatprep.subr.bf16.mxu0 0
        %545 = vmatpush1.bf16.msra.mxu0 %v512
        %546 = vmatprep.subr.bf16.mxu0 0
        %547 = vmatpush1.bf16.msra.mxu0 %v513
        %548 = vmatprep.subr.bf16.mxu0 0
        %549 = vmatpush1.bf16.msra.mxu0 %v514
        %550 = vmatprep.subr.bf16.mxu0 0
        %551 = vmatpush1.bf16.msra.mxu0 %v515
        %552 = vmatprep.subr.bf16.mxu0 0
        %553 = vmatpush1.bf16.msra.mxu0 %v516
        %554 = vmatprep.subr.bf16.mxu0 0
        %555 = vmatpush1.bf16.msra.mxu0 %v517
        %556 = vmatprep.subr.bf16.mxu0 0
        %557 = vmatpush1.bf16.msra.mxu0 %v518
        %558 = vmatprep.subr.bf16.mxu0 0
        %559 = vmatpush1.bf16.msra.mxu0 %v519
        %560 = vmatprep.subr.bf16.mxu0 0
        %561 = vmatpush1.bf16.msra.mxu0 %v520
        %562 = vmatprep.subr.bf16.mxu0 0
        %563 = vmatpush1.bf16.msra.mxu0 %v521
        %564 = vmatprep.subr.bf16.mxu0 0
        %565 = vmatpush1.bf16.msra.mxu0 %v522
        %566 = vmatprep.subr.bf16.mxu0 0
        %567 = vmatpush1.bf16.msra.mxu0 %v523
        %568 = vmatprep.subr.bf16.mxu0 0
        %569 = vmatpush1.bf16.msra.mxu0 %v524
        %570 = vmatprep.subr.bf16.mxu0 0
        %571 = vmatpush1.bf16.msra.mxu0 %v525
        %572 = vmatprep.subr.bf16.mxu0 0
        %573 = vmatpush1.bf16.msra.mxu0 %v526
        %574 = vmatprep.subr.bf16.mxu0 0
        %575 = vmatpush1.bf16.msra.mxu0 %v527
        %576 = vmatprep.mubr.bf16.mxu0 %v394
        %577 = vmatmul.mubr.bf16.gmra.mrb[0].mxu0 %v393
        %v578 = vpop.f32.mrb[0].mxu0
        %v579 = vadd.f32 %v446, %v578
        %v580 = vpop.f32.mrb[0].mxu0
        %v581 = vpop.f32.mrb[0].mxu0
        %v582 = vadd.f32 %v446, %v581
        %v583 = vpop.f32.mrb[0].mxu0
        %584 = vmatprep.mubr.bf16.mxu0 %v396
        %585 = vmatmul.mubr.bf16.gmra.mrb[0].mxu0 %v395
        %v586 = vpop.f32.mrb[0].mxu0
        %v587 = vadd.f32 %v446, %v586
        %v588 = vpop.f32.mrb[0].mxu0
        %v589 = vpop.f32.mrb[0].mxu0
        %v590 = vadd.f32 %v446, %v589
        %v591 = vpop.f32.mrb[0].mxu0
        %592 = vmatprep.mubr.bf16.mxu0 %v398
        %593 = vmatmul.mubr.bf16.gmra.mrb[0].mxu0 %v397
        %v594 = vpop.f32.mrb[0].mxu0
        %v595 = vadd.f32 %v446, %v594
        %v596 = vpop.f32.mrb[0].mxu0
        %v597 = vpop.f32.mrb[0].mxu0
        %v598 = vadd.f32 %v446, %v597
        %v599 = vpop.f32.mrb[0].mxu0
        %600 = vmatprep.mubr.bf16.mxu0 %v400
        %601 = vmatmul.mubr.bf16.gmra.mrb[0].mxu0 %v399
        %v602 = vpop.f32.mrb[0].mxu0
        %v603 = vadd.f32 %v446, %v602
        %v604 = vpop.f32.mrb[0].mxu0
        %v605 = vpop.f32.mrb[0].mxu0
        %v606 = vadd.f32 %v446, %v605
        %v607 = vpop.f32.mrb[0].mxu0
        %608 = vmatprep.mubr.bf16.mxu0 %v402
        %609 = vmatmul.mubr.bf16.gmra.mrb[0].mxu0 %v401
        %v610 = vpop.f32.mrb[0].mxu0
        %v611 = vadd.f32 %v446, %v610
        %v612 = vpop.f32.mrb[0].mxu0
        %v613 = vpop.f32.mrb[0].mxu0
        %v614 = vadd.f32 %v446, %v613
        %v615 = vpop.f32.mrb[0].mxu0
        %616 = vmatprep.mubr.bf16.mxu0 %v404
        %617 = vmatmul.mubr.bf16.gmra.mrb[0].mxu0 %v403
        %v618 = vpop.f32.mrb[0].mxu0
        %v619 = vadd.f32 %v446, %v618
        %v620 = vpop.f32.mrb[0].mxu0
        %v621 = vpop.f32.mrb[0].mxu0
        %v622 = vadd.f32 %v446, %v621
        %v623 = vpop.f32.mrb[0].mxu0
        %624 = vmatprep.mubr.bf16.mxu0 %v406
        %625 = vmatmul.mubr.bf16.gmra.mrb[0].mxu0 %v405
        %v626 = vpop.f32.mrb[0].mxu0
        %v627 = vadd.f32 %v446, %v626
        %v628 = vpop.f32.mrb[0].mxu0
        %v629 = vpop.f32.mrb[0].mxu0
        %v630 = vadd.f32 %v446, %v629
        %v631 = vpop.f32.mrb[0].mxu0
        %632 = vmatprep.mubr.bf16.mxu0 %v408
        %633 = vmatmul.mubr.bf16.gmra.mrb[0].mxu0 %v407
        %v634 = vpop.f32.mrb[0].mxu0
        %v635 = vadd.f32 %v446, %v634
        %v636 = vpop.f32.mrb[0].mxu0
        %v637 = vpop.f32.mrb[0].mxu0
        %v638 = vadd.f32 %v446, %v637
        %v639 = vpop.f32.mrb[0].mxu0
        %640 = vdwg.mxu0
        %v641 = vmax.f32 %v579, 0.0
        %v642 = vmax.f32 %v582, 0.0
        %v643 = vmax.f32 %v587, 0.0
        %v644 = vmax.f32 %v590, 0.0
        %v645 = vmax.f32 %v595, 0.0
        %v646 = vmax.f32 %v598, 0.0
        %v647 = vmax.f32 %v603, 0.0
        %v648 = vmax.f32 %v606, 0.0
        %v649 = vmax.f32 %v611, 0.0
        %v650 = vmax.f32 %v614, 0.0
        %v651 = vmax.f32 %v619, 0.0
        %v652 = vmax.f32 %v622, 0.0
        %v653 = vmax.f32 %v627, 0.0
        %v654 = vmax.f32 %v630, 0.0
        %v655 = vmax.f32 %v635, 0.0
        %v656 = vmax.f32 %v638, 0.0
        %v657 = vpack.c.bf16 %v642, %v641
        %v658 = vpack.c.bf16 %v644, %v643
        %v659 = vpack.c.bf16 %v646, %v645
        %v660 = vpack.c.bf16 %v648, %v647
        %v661 = vpack.c.bf16 %v650, %v649
        %v662 = vpack.c.bf16 %v652, %v651
        %v663 = vpack.c.bf16 %v654, %v653
        %v664 = vpack.c.bf16 %v656, %v655
        %v665 = vld [vmem:[#allocation7] sm:$0xf]
        %v666 = vld [vmem:[#allocation7 + $0x4] sm:$0xf]
        %v667 = vld [vmem:[#allocation7 + $0x8] sm:$0xf]
        %v668 = vld [vmem:[#allocation7 + $0xc] sm:$0xf]
        %v669 = vld [vmem:[#allocation7 + $0x10] sm:$0xf]
        %v670 = vld [vmem:[#allocation7 + $0x14] sm:$0xf]
        %v671 = vld [vmem:[#allocation7 + $0x18] sm:$0xf]
        %v672 = vld [vmem:[#allocation7 + $0x1c] sm:$0xf]
        %v673 = vld [vmem:[#allocation7 + $0x20] sm:$0xf]
        %v674 = vld [vmem:[#allocation7 + $0x24] sm:$0xf]
        %v675 = vld [vmem:[#allocation7 + $0x28] sm:$0xf]
        %v676 = vld [vmem:[#allocation7 + $0x2c] sm:$0xf]
        %v677 = vld [vmem:[#allocation7 + $0x30] sm:$0xf]
        %v678 = vld [vmem:[#allocation7 + $0x34] sm:$0xf]
        %v679 = vld [vmem:[#allocation7 + $0x38] sm:$0xf]
        %v680 = vld [vmem:[#allocation7 + $0x3c] sm:$0xf]
        %v681 = vld [vmem:[%s4] sm:$0x1]
        %v683 = vlaneseq
        %v684 = vshrl.u32 %v683, 7
        %v685 = vsub.s32 0, %v684
        %v686 = vrot.slane %v681, %v685
        %v704 = vunpack.c.l.b16 %v665
        %v705 = vunpack.c.l.b16 %v666
        %v706 = vunpack.c.l.b16 %v667
        %v707 = vunpack.c.l.b16 %v668
        %v708 = vunpack.c.l.b16 %v669
        %v709 = vunpack.c.l.b16 %v670
        %v710 = vunpack.c.l.b16 %v671
        %v711 = vunpack.c.l.b16 %v672
        %v712 = vunpack.c.l.b16 %v673
        %v713 = vunpack.c.l.b16 %v674
        %v714 = vunpack.c.l.b16 %v675
        %v715 = vunpack.c.l.b16 %v676
        %v716 = vunpack.c.l.b16 %v677
        %v717 = vunpack.c.l.b16 %v678
        %v718 = vunpack.c.l.b16 %v679
        %v719 = vunpack.c.l.b16 %v680
        %v720 = vpack.c.b16 %v705, %v704
        %v721 = vpack.c.b16 %v707, %v706
        %v722 = vpack.c.b16 %v709, %v708
        %v723 = vpack.c.b16 %v711, %v710
        %v724 = vpack.c.b16 %v713, %v712
        %v725 = vpack.c.b16 %v715, %v714
        %v726 = vpack.c.b16 %v717, %v716
        %v727 = vpack.c.b16 %v719, %v718
        %736 = vmatprep.subr.bf16.mxu0 0
        %737 = vmatpush1.bf16.msra.mxu0 %v720
        %738 = vmatprep.subr.bf16.mxu0 0
        %739 = vmatpush1.bf16.msra.mxu0 %v721
        %740 = vmatprep.subr.bf16.mxu0 0
        %741 = vmatpush1.bf16.msra.mxu0 %v722
        %742 = vmatprep.subr.bf16.mxu0 0
        %743 = vmatpush1.bf16.msra.mxu0 %v723
        %744 = vmatprep.subr.bf16.mxu0 0
        %745 = vmatpush1.bf16.msra.mxu0 %v724
        %746 = vmatprep.subr.bf16.mxu0 0
        %747 = vmatpush1.bf16.msra.mxu0 %v725
        %748 = vmatprep.subr.bf16.mxu0 0
        %749 = vmatpush1.bf16.msra.mxu0 %v726
        %750 = vmatprep.subr.bf16.mxu0 0
        %751 = vmatpush1.bf16.msra.mxu0 %v727
        %752 = vmatprep.subr.bf16.mxu0 0
        %753 = vmatpush1.bf16.msra.mxu0 0
        %754 = vmatprep.subr.bf16.mxu0 0
        %755 = vmatpush1.bf16.msra.mxu0 0
        %756 = vmatprep.subr.bf16.mxu0 0
        %757 = vmatpush1.bf16.msra.mxu0 0
        %758 = vmatprep.subr.bf16.mxu0 0
        %759 = vmatpush1.bf16.msra.mxu0 0
        %760 = vmatprep.subr.bf16.mxu0 0
        %761 = vmatpush1.bf16.msra.mxu0 0
        %762 = vmatprep.subr.bf16.mxu0 0
        %763 = vmatpush1.bf16.msra.mxu0 0
        %764 = vmatprep.subr.bf16.mxu0 0
        %765 = vmatpush1.bf16.msra.mxu0 0
        %766 = vmatprep.subr.bf16.mxu0 0
        %767 = vmatpush1.bf16.msra.mxu0 0
        %768 = vmatprep.mubr.bf16.mxu0 0
        %769 = vmatmul.mubr.bf16.gmra.mrb[0].mxu0 %v657
        %v770 = vpop.f32.mrb[0].mxu0
        %v771 = vadd.f32 %v686, %v770
        %v772 = vpop.f32.mrb[0].mxu0
        %v773 = vpop.f32.mrb[0].mxu0
        %v774 = vadd.f32 %v686, %v773
        %v775 = vpop.f32.mrb[0].mxu0
        %776 = vmatprep.mubr.bf16.mxu0 0
        %777 = vmatmul.mubr.bf16.gmra.mrb[0].mxu0 %v658
        %v778 = vpop.f32.mrb[0].mxu0
        %v779 = vadd.f32 %v686, %v778
        %v780 = vpop.f32.mrb[0].mxu0
        %v781 = vpop.f32.mrb[0].mxu0
        %v782 = vadd.f32 %v686, %v781
        %v783 = vpop.f32.mrb[0].mxu0
        %784 = vmatprep.mubr.bf16.mxu0 0
        %785 = vmatmul.mubr.bf16.gmra.mrb[0].mxu0 %v659
        %v786 = vpop.f32.mrb[0].mxu0
        %v787 = vadd.f32 %v686, %v786
        %v788 = vpop.f32.mrb[0].mxu0
        %v789 = vpop.f32.mrb[0].mxu0
        %v790 = vadd.f32 %v686, %v789
        %v791 = vpop.f32.mrb[0].mxu0
        %792 = vmatprep.mubr.bf16.mxu0 0
        %793 = vmatmul.mubr.bf16.gmra.mrb[0].mxu0 %v660
        %v794 = vpop.f32.mrb[0].mxu0
        %v795 = vadd.f32 %v686, %v794
        %v796 = vpop.f32.mrb[0].mxu0
        %v797 = vpop.f32.mrb[0].mxu0
        %v798 = vadd.f32 %v686, %v797
        %v799 = vpop.f32.mrb[0].mxu0
        %800 = vmatprep.mubr.bf16.mxu0 0
        %801 = vmatmul.mubr.bf16.gmra.mrb[0].mxu0 %v661
        %v802 = vpop.f32.mrb[0].mxu0
        %v803 = vadd.f32 %v686, %v802
        %v804 = vpop.f32.mrb[0].mxu0
        %v805 = vpop.f32.mrb[0].mxu0
        %v806 = vadd.f32 %v686, %v805
        %v807 = vpop.f32.mrb[0].mxu0
        %808 = vmatprep.mubr.bf16.mxu0 0
        %809 = vmatmul.mubr.bf16.gmra.mrb[0].mxu0 %v662
        %v810 = vpop.f32.mrb[0].mxu0
        %v811 = vadd.f32 %v686, %v810
        %v812 = vpop.f32.mrb[0].mxu0
        %v813 = vpop.f32.mrb[0].mxu0
        %v814 = vadd.f32 %v686, %v813
        %v815 = vpop.f32.mrb[0].mxu0
        %816 = vmatprep.mubr.bf16.mxu0 0
        %817 = vmatmul.mubr.bf16.gmra.mrb[0].mxu0 %v663
        %v818 = vpop.f32.mrb[0].mxu0
        %v819 = vadd.f32 %v686, %v818
        %v820 = vpop.f32.mrb[0].mxu0
        %v821 = vpop.f32.mrb[0].mxu0
        %v822 = vadd.f32 %v686, %v821
        %v823 = vpop.f32.mrb[0].mxu0
        %824 = vmatprep.mubr.bf16.mxu0 0
        %825 = vmatmul.mubr.bf16.gmra.mrb[0].mxu0 %v664
        %v826 = vpop.f32.mrb[0].mxu0
        %v827 = vadd.f32 %v686, %v826
        %v828 = vpop.f32.mrb[0].mxu0
        %v829 = vpop.f32.mrb[0].mxu0
        %v830 = vadd.f32 %v686, %v829
        %v831 = vpop.f32.mrb[0].mxu0
        %832 = vdwg.mxu0
        %v833 = vmax.f32 %v771, 0.0
        %v834 = vmax.f32 %v774, 0.0
        %v835 = vmax.f32 %v779, 0.0
        %v836 = vmax.f32 %v782, 0.0
        %v837 = vmax.f32 %v787, 0.0
        %v838 = vmax.f32 %v790, 0.0
        %v839 = vmax.f32 %v795, 0.0
        %v840 = vmax.f32 %v798, 0.0
        %v841 = vmax.f32 %v803, 0.0
        %v842 = vmax.f32 %v806, 0.0
        %v843 = vmax.f32 %v811, 0.0
        %v844 = vmax.f32 %v814, 0.0
        %v845 = vmax.f32 %v819, 0.0
        %v846 = vmax.f32 %v822, 0.0
        %v847 = vmax.f32 %v827, 0.0
        %v848 = vmax.f32 %v830, 0.0
        %v849 = vpack.c.bf16 %v834, %v833
        %v850 = vpack.c.bf16 %v836, %v835
        %v851 = vpack.c.bf16 %v838, %v837
        %v852 = vpack.c.bf16 %v840, %v839
        %v853 = vpack.c.bf16 %v842, %v841
        %v854 = vpack.c.bf16 %v844, %v843
        %v855 = vpack.c.bf16 %v846, %v845
        %v856 = vpack.c.bf16 %v848, %v847
        %v857 = vld [vmem:[#allocation8] sm:$0xf]
        %v858 = vld [vmem:[#allocation8 + $0x4] sm:$0xf]
        %v859 = vld [vmem:[#allocation8 + $0x8] sm:$0xf]
        %v860 = vld [vmem:[#allocation8 + $0xc] sm:$0xf]
        %v861 = vld [vmem:[#allocation8 + $0x10] sm:$0xf]
        %v862 = vld [vmem:[#allocation8 + $0x14] sm:$0xf]
        %v863 = vld [vmem:[#allocation8 + $0x18] sm:$0xf]
        %v864 = vld [vmem:[#allocation8 + $0x1c] sm:$0xf]
        %v865 = vld [vmem:[#allocation8 + $0x20] sm:$0xf]
        %v866 = vld [vmem:[#allocation8 + $0x24] sm:$0xf]
        %v867 = vld [vmem:[#allocation8 + $0x28] sm:$0xf]
        %v868 = vld [vmem:[#allocation8 + $0x2c] sm:$0xf]
        %v869 = vld [vmem:[#allocation8 + $0x30] sm:$0xf]
        %v870 = vld [vmem:[#allocation8 + $0x34] sm:$0xf]
        %v871 = vld [vmem:[#allocation8 + $0x38] sm:$0xf]
        %v872 = vld [vmem:[#allocation8 + $0x3c] sm:$0xf]
        %v873 = vld [vmem:[%s6] sm:$0x1]
        %v875 = vlaneseq
        %v876 = vshrl.u32 %v875, 7
        %v877 = vsub.s32 0, %v876
        %v878 = vrot.slane %v873, %v877
        %v896 = vunpack.c.l.b16 %v857
        %v897 = vunpack.c.l.b16 %v858
        %v898 = vunpack.c.l.b16 %v859
        %v899 = vunpack.c.l.b16 %v860
        %v900 = vunpack.c.l.b16 %v861
        %v901 = vunpack.c.l.b16 %v862
        %v902 = vunpack.c.l.b16 %v863
        %v903 = vunpack.c.l.b16 %v864
        %v904 = vunpack.c.l.b16 %v865
        %v905 = vunpack.c.l.b16 %v866
        %v906 = vunpack.c.l.b16 %v867
        %v907 = vunpack.c.l.b16 %v868
        %v908 = vunpack.c.l.b16 %v869
        %v909 = vunpack.c.l.b16 %v870
        %v910 = vunpack.c.l.b16 %v871
        %v911 = vunpack.c.l.b16 %v872
        %v912 = vpack.c.b16 %v897, %v896
        %v913 = vpack.c.b16 %v899, %v898
        %v914 = vpack.c.b16 %v901, %v900
        %v915 = vpack.c.b16 %v903, %v902
        %v916 = vpack.c.b16 %v905, %v904
        %v917 = vpack.c.b16 %v907, %v906
        %v918 = vpack.c.b16 %v909, %v908
        %v919 = vpack.c.b16 %v911, %v910
        %928 = vmatprep.subr.bf16.mxu0 0
        %929 = vmatpush1.bf16.msra.mxu0 %v912
        %930 = vmatprep.subr.bf16.mxu0 0
        %931 = vmatpush1.bf16.msra.mxu0 %v913
        %932 = vmatprep.subr.bf16.mxu0 0
        %933 = vmatpush1.bf16.msra.mxu0 %v914
        %934 = vmatprep.subr.bf16.mxu0 0
        %935 = vmatpush1.bf16.msra.mxu0 %v915
        %936 = vmatprep.subr.bf16.mxu0 0
        %937 = vmatpush1.bf16.msra.mxu0 %v916
        %938 = vmatprep.subr.bf16.mxu0 0
        %939 = vmatpush1.bf16.msra.mxu0 %v917
        %940 = vmatprep.subr.bf16.mxu0 0
        %941 = vmatpush1.bf16.msra.mxu0 %v918
        %942 = vmatprep.subr.bf16.mxu0 0
        %943 = vmatpush1.bf16.msra.mxu0 %v919
        %944 = vmatprep.subr.bf16.mxu0 0
        %945 = vmatpush1.bf16.msra.mxu0 0
        %946 = vmatprep.subr.bf16.mxu0 0
        %947 = vmatpush1.bf16.msra.mxu0 0
        %948 = vmatprep.subr.bf16.mxu0 0
        %949 = vmatpush1.bf16.msra.mxu0 0
        %950 = vmatprep.subr.bf16.mxu0 0
        %951 = vmatpush1.bf16.msra.mxu0 0
        %952 = vmatprep.subr.bf16.mxu0 0
        %953 = vmatpush1.bf16.msra.mxu0 0
        %954 = vmatprep.subr.bf16.mxu0 0
        %955 = vmatpush1.bf16.msra.mxu0 0
        %956 = vmatprep.subr.bf16.mxu0 0
        %957 = vmatpush1.bf16.msra.mxu0 0
        %958 = vmatprep.subr.bf16.mxu0 0
        %959 = vmatpush1.bf16.msra.mxu0 0
        %960 = vmatprep.mubr.bf16.mxu0 0
        %961 = vmatmul.mubr.bf16.gmra.mrb[0].mxu0 %v849
        %v962 = vpop.f32.mrb[0].mxu0
        %v963 = vadd.f32 %v878, %v962
        %v964 = vpop.f32.mrb[0].mxu0
        %v965 = vpop.f32.mrb[0].mxu0
        %v966 = vadd.f32 %v878, %v965
        %v967 = vpop.f32.mrb[0].mxu0
        %968 = vmatprep.mubr.bf16.mxu0 0
        %969 = vmatmul.mubr.bf16.gmra.mrb[0].mxu0 %v850
        %v970 = vpop.f32.mrb[0].mxu0
        %v971 = vadd.f32 %v878, %v970
        %v972 = vpop.f32.mrb[0].mxu0
        %v973 = vpop.f32.mrb[0].mxu0
        %v974 = vadd.f32 %v878, %v973
        %v975 = vpop.f32.mrb[0].mxu0
        %976 = vmatprep.mubr.bf16.mxu0 0
        %977 = vmatmul.mubr.bf16.gmra.mrb[0].mxu0 %v851
        %v978 = vpop.f32.mrb[0].mxu0
        %v979 = vadd.f32 %v878, %v978
        %v980 = vpop.f32.mrb[0].mxu0
        %v981 = vpop.f32.mrb[0].mxu0
        %v982 = vadd.f32 %v878, %v981
        %v983 = vpop.f32.mrb[0].mxu0
        %984 = vmatprep.mubr.bf16.mxu0 0
        %985 = vmatmul.mubr.bf16.gmra.mrb[0].mxu0 %v852
        %v986 = vpop.f32.mrb[0].mxu0
        %v987 = vadd.f32 %v878, %v986
        %v988 = vpop.f32.mrb[0].mxu0
        %v989 = vpop.f32.mrb[0].mxu0
        %v990 = vadd.f32 %v878, %v989
        %v991 = vpop.f32.mrb[0].mxu0
        %992 = vmatprep.mubr.bf16.mxu0 0
        %993 = vmatmul.mubr.bf16.gmra.mrb[0].mxu0 %v853
        %v994 = vpop.f32.mrb[0].mxu0
        %v995 = vadd.f32 %v878, %v994
        %v996 = vpop.f32.mrb[0].mxu0
        %v997 = vpop.f32.mrb[0].mxu0
        %v998 = vadd.f32 %v878, %v997
        %v999 = vpop.f32.mrb[0].mxu0
        %1000 = vmatprep.mubr.bf16.mxu0 0
        %1001 = vmatmul.mubr.bf16.gmra.mrb[0].mxu0 %v854
        %v1002 = vpop.f32.mrb[0].mxu0
        %v1003 = vadd.f32 %v878, %v1002
        %v1004 = vpop.f32.mrb[0].mxu0
        %v1005 = vpop.f32.mrb[0].mxu0
        %v1006 = vadd.f32 %v878, %v1005
        %v1007 = vpop.f32.mrb[0].mxu0
        %1008 = vmatprep.mubr.bf16.mxu0 0
        %1009 = vmatmul.mubr.bf16.gmra.mrb[0].mxu0 %v855
        %v1010 = vpop.f32.mrb[0].mxu0
        %v1011 = vadd.f32 %v878, %v1010
        %v1012 = vpop.f32.mrb[0].mxu0
        %v1013 = vpop.f32.mrb[0].mxu0
        %v1014 = vadd.f32 %v878, %v1013
        %v1015 = vpop.f32.mrb[0].mxu0
        %1016 = vmatprep.mubr.bf16.mxu0 0
        %1017 = vmatmul.mubr.bf16.gmra.mrb[0].mxu0 %v856
        %v1018 = vpop.f32.mrb[0].mxu0
        %v1019 = vadd.f32 %v878, %v1018
        %v1020 = vpop.f32.mrb[0].mxu0
        %v1021 = vpop.f32.mrb[0].mxu0
        %v1022 = vadd.f32 %v878, %v1021
        %v1023 = vpop.f32.mrb[0].mxu0
        %1024 = vdwg.mxu0
        %1025 = vmax.xlane.f32.xlu0 %v963
        %v1026 = vpop.xlane.xlu0 %1025
        %1027 = vmax.xlane.f32.xlu0 %v966
        %v1028 = vpop.xlane.xlu0 %1027
        %1029 = vmax.xlane.f32.xlu0 %v971
        %v1030 = vpop.xlane.xlu0 %1029
        %1031 = vmax.xlane.f32.xlu0 %v974
        %v1032 = vpop.xlane.xlu0 %1031
        %1033 = vmax.xlane.f32.xlu0 %v979
        %v1034 = vpop.xlane.xlu0 %1033
        %1035 = vmax.xlane.f32.xlu0 %v982
        %v1036 = vpop.xlane.xlu0 %1035
        %1037 = vmax.xlane.f32.xlu0 %v987
        %v1038 = vpop.xlane.xlu0 %1037
        %1039 = vmax.xlane.f32.xlu0 %v990
        %v1040 = vpop.xlane.xlu0 %1039
        %1041 = vmax.xlane.f32.xlu0 %v995
        %v1042 = vpop.xlane.xlu0 %1041
        %1043 = vmax.xlane.f32.xlu0 %v998
        %v1044 = vpop.xlane.xlu0 %1043
        %1045 = vmax.xlane.f32.xlu0 %v1003
        %v1046 = vpop.xlane.xlu0 %1045
        %1047 = vmax.xlane.f32.xlu0 %v1006
        %v1048 = vpop.xlane.xlu0 %1047
        %1049 = vmax.xlane.f32.xlu0 %v1011
        %v1050 = vpop.xlane.xlu0 %1049
        %1051 = vmax.xlane.f32.xlu0 %v1014
        %v1052 = vpop.xlane.xlu0 %1051
        %1053 = vmax.xlane.f32.xlu0 %v1019
        %v1054 = vpop.xlane.xlu0 %1053
        %1055 = vmax.xlane.f32.xlu0 %v1022
        %v1056 = vpop.xlane.xlu0 %1055
        %v1057 = vsub.f32 %v963, %v1026
        %v1058 = vsub.f32 %v966, %v1028
        %v1059 = vsub.f32 %v971, %v1030
        %v1060 = vsub.f32 %v974, %v1032
        %v1061 = vsub.f32 %v979, %v1034
        %v1062 = vsub.f32 %v982, %v1036
        %v1063 = vsub.f32 %v987, %v1038
        %v1064 = vsub.f32 %v990, %v1040
        %v1065 = vsub.f32 %v995, %v1042
        %v1066 = vsub.f32 %v998, %v1044
        %v1067 = vsub.f32 %v1003, %v1046
        %v1068 = vsub.f32 %v1006, %v1048
        %v1069 = vsub.f32 %v1011, %v1050
        %v1070 = vsub.f32 %v1014, %v1052
        %v1071 = vsub.f32 %v1019, %v1054
        %v1072 = vsub.f32 %v1022, %v1056
        %v1073 = vmul.f32 %v1057, 1.442695
        %v1074 = vpow.pop %v1073
        %v1075 = vmul.f32 %v1058, 1.442695
        %v1076 = vpow.pop %v1075
        %v1077 = vmul.f32 %v1059, 1.442695
        %v1078 = vpow.pop %v1077
        %v1079 = vmul.f32 %v1060, 1.442695
        %v1080 = vpow.pop %v1079
        %v1081 = vmul.f32 %v1061, 1.442695
        %v1082 = vpow.pop %v1081
        %v1083 = vmul.f32 %v1062, 1.442695
        %v1084 = vpow.pop %v1083
        %v1085 = vmul.f32 %v1063, 1.442695
        %v1086 = vpow.pop %v1085
        %v1087 = vmul.f32 %v1064, 1.442695
        %v1088 = vpow.pop %v1087
        %v1089 = vmul.f32 %v1065, 1.442695
        %v1090 = vpow.pop %v1089
        %v1091 = vmul.f32 %v1066, 1.442695
        %v1092 = vpow.pop %v1091
        %v1093 = vmul.f32 %v1067, 1.442695
        %v1094 = vpow.pop %v1093
        %v1095 = vmul.f32 %v1068, 1.442695
        %v1096 = vpow.pop %v1095
        %v1097 = vmul.f32 %v1069, 1.442695
        %v1098 = vpow.pop %v1097
        %v1099 = vmul.f32 %v1070, 1.442695
        %v1100 = vpow.pop %v1099
        %v1101 = vmul.f32 %v1071, 1.442695
        %v1102 = vpow.pop %v1101
        %v1103 = vmul.f32 %v1072, 1.442695
        %v1104 = vpow.pop %v1103
        %1105 = vadd.xlane.f32.xlu0 %v1074
        %v1106 = vpop.xlane.xlu0 %1105
        %1107 = vadd.xlane.f32.xlu0 %v1076
        %v1108 = vpop.xlane.xlu0 %1107
        %1109 = vadd.xlane.f32.xlu0 %v1078
        %v1110 = vpop.xlane.xlu0 %1109
        %1111 = vadd.xlane.f32.xlu0 %v1080
        %v1112 = vpop.xlane.xlu0 %1111
        %1113 = vadd.xlane.f32.xlu0 %v1082
        %v1114 = vpop.xlane.xlu0 %1113
        %1115 = vadd.xlane.f32.xlu0 %v1084
        %v1116 = vpop.xlane.xlu0 %1115
        %1117 = vadd.xlane.f32.xlu0 %v1086
        %v1118 = vpop.xlane.xlu0 %1117
        %1119 = vadd.xlane.f32.xlu0 %v1088
        %v1120 = vpop.xlane.xlu0 %1119
        %1121 = vadd.xlane.f32.xlu0 %v1090
        %v1122 = vpop.xlane.xlu0 %1121
        %1123 = vadd.xlane.f32.xlu0 %v1092
        %v1124 = vpop.xlane.xlu0 %1123
        %1125 = vadd.xlane.f32.xlu0 %v1094
        %v1126 = vpop.xlane.xlu0 %1125
        %1127 = vadd.xlane.f32.xlu0 %v1096
        %v1128 = vpop.xlane.xlu0 %1127
        %1129 = vadd.xlane.f32.xlu0 %v1098
        %v1130 = vpop.xlane.xlu0 %1129
        %1131 = vadd.xlane.f32.xlu0 %v1100
        %v1132 = vpop.xlane.xlu0 %1131
        %1133 = vadd.xlane.f32.xlu0 %v1102
        %v1134 = vpop.xlane.xlu0 %1133
        %1135 = vadd.xlane.f32.xlu0 %v1104
        %v1136 = vpop.xlane.xlu0 %1135
        %v1137 = vrcp.pop %v1106
        %v1138 = vmul.f32 %v1074, %v1137
        %v1139 = vrcp.pop %v1108
        %v1140 = vmul.f32 %v1076, %v1139
        %v1141 = vrcp.pop %v1110
        %v1142 = vmul.f32 %v1078, %v1141
        %v1143 = vrcp.pop %v1112
        %v1144 = vmul.f32 %v1080, %v1143
        %v1145 = vrcp.pop %v1114
        %v1146 = vmul.f32 %v1082, %v1145
        %v1147 = vrcp.pop %v1116
        %v1148 = vmul.f32 %v1084, %v1147
        %v1149 = vrcp.pop %v1118
        %v1150 = vmul.f32 %v1086, %v1149
        %v1151 = vrcp.pop %v1120
        %v1152 = vmul.f32 %v1088, %v1151
        %v1153 = vrcp.pop %v1122
        %v1154 = vmul.f32 %v1090, %v1153
        %v1155 = vrcp.pop %v1124
        %v1156 = vmul.f32 %v1092, %v1155
        %v1157 = vrcp.pop %v1126
        %v1158 = vmul.f32 %v1094, %v1157
        %v1159 = vrcp.pop %v1128
        %v1160 = vmul.f32 %v1096, %v1159
        %v1161 = vrcp.pop %v1130
        %v1162 = vmul.f32 %v1098, %v1161
        %v1163 = vrcp.pop %v1132
        %v1164 = vmul.f32 %v1100, %v1163
        %v1165 = vrcp.pop %v1134
        %v1166 = vmul.f32 %v1102, %v1165
        %v1167 = vrcp.pop %v1136
        %v1168 = vmul.f32 %v1104, %v1167
        %1169 = vst [vmem:[%s348] sm:$0xff] %v1138
        %1170 = vst [vmem:[%s348 + $0x8] sm:$0xff] %v1140
        %1171 = vst [vmem:[%s348 + $0x10] sm:$0xff] %v1142
        %1172 = vst [vmem:[%s348 + $0x18] sm:$0xff] %v1144
        %1173 = vst [vmem:[%s348 + $0x20] sm:$0xff] %v1146
        %1174 = vst [vmem:[%s348 + $0x28] sm:$0xff] %v1148
        %1175 = vst [vmem:[%s348 + $0x30] sm:$0xff] %v1150
        %1176 = vst [vmem:[%s348 + $0x38] sm:$0xff] %v1152
        %1177 = vst [vmem:[%s348 + $0x40] sm:$0xff] %v1154
        %1178 = vst [vmem:[%s348 + $0x48] sm:$0xff] %v1156
        %1179 = vst [vmem:[%s348 + $0x50] sm:$0xff] %v1158
        %1180 = vst [vmem:[%s348 + $0x58] sm:$0xff] %v1160
        %1181 = vst [vmem:[%s348 + $0x60] sm:$0xff] %v1162
        %1182 = vst [vmem:[%s348 + $0x68] sm:$0xff] %v1164
        %1183 = vst [vmem:[%s348 + $0x70] sm:$0xff] %v1166
        %1184 = vst [vmem:[%s348 + $0x78] sm:$0xff] %v1168
        %s1185 = sand.u32 %s186, 1
        %s1186 = scalar_lea.sflag [#allocation4], %s1185
        %s1187 = sand.u32 %s186, 1
        %s1188 = smul.addr %s1187, 128
        %s1189 = scalar_lea.vmem [#allocation10], %s1188
        // Predicated region
        $region65: #{tpu_custom_call.1} parent=47 // pred_check
          %p1190 = pneg %p196
        $region66: #{tpu_custom_call.1} parent=47 // pred_check_branch
          %1192 = sbr.rel (%p1190) target = $region68
        $region67: #{tpu_custom_call.1} parent=47 // pred_region
          %s1193 = smul.u32 16, %s26
          %s1194 = ssub.s32 63, %s1193
          %p1195 = scmp.lt.s32.totalorder %s1194, 16
          %s1196 = scalar_select %p1195, %s1194, 16
          %s1197 = smul.u32 128, %s1196
          %s1199 = ssub.s32 2048, %s1197
          %1200 = vsyncadd %s1186, %s1199
          %p1201 = scmp.ne.s32.totalorder 0, %s1197
          %s1202 = smul.addr %s1193, 128
          %s1203 = scalar_lea.hbm %s7, %s1202
          %s1204 = smul.u32 8, %s1196
          %s1205 = sshll.u32 %s1189, 4
          %s1206 = int_to_ptr.vmem [resolvable:$true] %s1205
          %s1207 = sshll.u32 %s1204, 4
          %1211 = dma.vmem_to_hbm [thread:$0]  (%p1201), %s1206, %s1207, %s1203, %s1186, 128, 128, 8
        $region68: #{tpu_custom_call.1} parent=47 // pred_fallthru
          _
      $region48: #{tpu_custom_call.1} parent=5 // pred_fallthru
        _
      %p1212 = scmp.le.s32.totalorder 2, %s21
      // Predicated region
      $region69: #{tpu_custom_call.1} parent=5 // pred_check
        %p1213 = pneg %p1212
      $region70: #{tpu_custom_call.1} parent=5 // pred_check_branch
        %1215 = sbr.rel (%p1213) target = $region72
      $region71: #{tpu_custom_call.1} parent=5 // pred_region
        %s1216 = ssub.s32 %s21, 2
        // Predicated region
        $region73: #{tpu_custom_call.1} parent=71 // pred_check
          %p1217 = pneg %p202
        $region74: #{tpu_custom_call.1} parent=71 // pred_check_branch
          %1219 = sbr.rel (%p1217) target = $region76
        $region75: #{tpu_custom_call.1} parent=71 // pred_region
          %s1220 = sand.u32 %s187, 1
          %s1221 = scalar_lea.sflag [#allocation4], %s1220
          %s1222 = sand.u32 %s187, 1
          %s1223 = smul.addr %s1222, 128
          %s1224 = scalar_lea.vmem [#allocation10], %s1223
          %1225 = dma.done %s1221, 2048
        $region76: #{tpu_custom_call.1} parent=71 // pred_fallthru
          _
      $region72: #{tpu_custom_call.1} parent=5 // pred_fallthru
        _
    $region6: #{tpu_custom_call.1} parent=1 // loop_footer
      %s25 = sadd.s32 1, %s21
    $region7: #{tpu_custom_call.1} parent=1 // loop_footer_branch
      %20 = sbr.rel target = $region3
    $region8: #{tpu_custom_call.1} parent=1 // loop_exit
      _
    %1226 = vsyncpa [#allocation3], 1
    %s1227 = scalar_lea.sflag [#allocation3], 1
    %1228 = vsyncpa %s1227, 1
    %1229 = vsyncpa [#allocation6], 1
    %1230 = vsyncpa [#allocation9], 1
    %1231 = vsyncpa [#allocation4], 1
    %s1232 = scalar_lea.sflag [#allocation4], 1
    %1233 = vsyncpa %s1232, 1

// kernel: tpu_custom_call.1
$region0: #{tpu_custom_call.1}
  #allocation0 [shape = 'u32[]', space=smem, size = 0x4, offset = 0x4, fixed_abs, tag = 'smem constant byte address 0x4 - core index']
  #allocation1 [shape = 'u32[144,128]{1,0:T(1,128)}', space=vmem, size = 0x12000, scoped, tag = 'internal scratch']
  %s0 = inlined_call_operand.hbm [shape: f32[500,256], index: 0, kind: input, shape index: {}]
  %s1 = inlined_call_operand.hbm [shape: bf16[256,128], index: 1, kind: input, shape index: {}]
  %s2 = inlined_call_operand.vmem [shape: f32[1,128], index: 2, kind: input, shape index: {}]
  %s3 = inlined_call_operand.hbm [shape: bf16[128,128], index: 3, kind: input, shape index: {}]
  %s4 = inlined_call_operand.vmem [shape: f32[1,128], index: 4, kind: input, shape index: {}]
  %s5 = inlined_call_operand.hbm [shape: bf16[128,128], index: 5, kind: input, shape index: {}]
  %s6 = inlined_call_operand.vmem [shape: f32[1,128], index: 6, kind: input, shape index: {}]
  %s7 = inlined_call_operand.hbm [shape: f32[500,128], index: 7, kind: output, shape index: {}]
  %s8 = sld [smem:[#allocation0]]
  $region77: #{tpu_custom_call.1} parent=0
    _
  %s10 = ssub.s32 1, %s8
  %s11 = scalar_select 0, %s10, %s8
  $region1: #{tpu_custom_call.1} parent=0
    #allocation2 [shape = 'u8[262144]{0}', space=vmem, size = 0x40000, scoped, tag = 'input window, operand 0']
    #allocation3 [shape = 's32[2]{0}', space=sflag, size = 0x8, scoped, tag = 'scoped memory for tpu_custom_call.1']
    #allocation4 [shape = 's32[2]{0}', space=sflag, size = 0x8, scoped, tag = 'scoped memory for tpu_custom_call.1']
    #allocation5 [shape = 'u8[65536]{0}', space=vmem, size = 0x10000, scoped, tag = 'input window, operand 1, single buffered']
    #allocation6 [shape = 's32[1]{0}', space=sflag, size = 0x4, scoped, tag = 'scoped memory for tpu_custom_call.1']
    #allocation7 [shape = 'u8[32768]{0}', space=vmem, size = 0x8000, scoped, tag = 'input window, operand 3, single buffered']
    #allocation8 [shape = 'u8[32768]{0}', space=vmem, size = 0x8000, scoped, tag = 'input window, operand 5, single buffered']
    #allocation9 [shape = 's32[1]{0}', space=sflag, size = 0x4, scoped, tag = 'scoped memory for tpu_custom_call.1']
    #allocation10 [shape = 'u8[131072]{0}', space=vmem, size = 0x20000, scoped, tag = 'output window, operand 0']
    %12 = vsyncpa [#allocation3], 0
    %s13 = scalar_lea.sflag [#allocation3], 1
    %14 = vsyncpa %s13, 0
    %15 = vsyncpa [#allocation6], 0
    %16 = vsyncpa [#allocation9], 0
    %17 = vsyncpa [#allocation4], 0
    %s18 = scalar_lea.sflag [#allocation4], 1
    %19 = vsyncpa %s18, 0
    loop: start=0, step=1, limit=6
    $region2: #{tpu_custom_call.1} parent=1 // loop_pre_header
      _
    $region3: #{tpu_custom_call.1} parent=1 // loop_header
      %s21 = sphi 0, %s25
      %p22 = scmp.ge.s32.totalorder %s21, 6
      %s31 = sphi 0, %s33
      %s34 = sphi 0, %s31
      %s35 = sphi 0, %s34
      %s51 = sphi 0, %s35
      %s55 = sphi 0, %s55
      %s57 = sphi 0, %s55
      %s58 = sphi 0, %s57
      %s72 = sphi 0, %s58
      %s76 = sphi 0, %s76
      %s78 = sphi 0, %s76
      %s79 = sphi 0, %s78
      %s93 = sphi 0, %s79
      %s97 = sphi 0, %s97
      %s99 = sphi 0, %s97
      %s100 = sphi 0, %s99
      %s114 = sphi 0, %s100
      %s118 = sphi 0, %s118
      %s120 = sphi 0, %s118
      %s121 = sphi 0, %s120
      %s135 = sphi 0, %s121
      %s139 = sphi 0, %s139
      %s141 = sphi 0, %s139
      %s142 = sphi 0, %s141
      %s156 = sphi 0, %s142
      %s160 = sphi 0, %s160
      %s162 = sphi 0, %s160
      %s163 = sphi 0, %s162
      %s177 = sphi 0, %s163
      %s183 = sphi 0, %s185
      %s186 = sphi 0, %s183
      %s187 = sphi 0, %s186
      %s203 = sphi 0, %s187
    $region4: #{tpu_custom_call.1} parent=1 // loop_header_branch
      %24 = sbr.rel (%p22) target = $region8
    $region5: #{tpu_custom_call.1} parent=1 // loop_body
      %s26 = ssub.s32 %s21, 1
      %s27 = ssub.s32 %s21, 2
      %s28 = sadd.s32 %s21, 1
      %s29 = ssub.s32 %s21, %s28
      %p30 = scmp.eq.s32.totalorder %s29, 0
      %s32 = sadd.s32 %s31, 1
      %s33 = scalar_select %p30, %s31, %s32
      %p36 = pneg %p30
      %p37 = scmp.eq.s32.totalorder %s21, 3
      %p38 = por %p36, %p37
      %p39 = scmp.ne.s32.totalorder %s31, %s34
      %p40 = scmp.eq.s32.totalorder %s21, 0
      %p41 = por %p39, %p40
      %p42 = scmp.ne.s32.totalorder %s31, %s34
      %p43 = scmp.eq.s32.totalorder %s26, 3
      %p44 = por %p42, %p43
      %p45 = scmp.ne.s32.totalorder %s34, %s35
      %p46 = scmp.eq.s32.totalorder %s26, 0
      %p47 = por %p45, %p46
      %p48 = scmp.ne.s32.totalorder %s34, %s35
      %p49 = scmp.eq.s32.totalorder %s27, 3
      %p50 = por %p48, %p49
      %p52 = scmp.ne.s32.totalorder %s35, %s51
      %p53 = scmp.eq.s32.totalorder %s27, 0
      %p54 = por %p52, %p53
      %s56 = sadd.s32 %s55, 1
      %p59 = scmp.eq.s32.totalorder %s21, 3
      %p60 = scmp.ne.s32.totalorder %s55, %s57
      %p61 = scmp.eq.s32.totalorder %s21, 0
      %p62 = por %p60, %p61
      %p63 = scmp.ne.s32.totalorder %s55, %s57
      %p64 = scmp.eq.s32.totalorder %s26, 3
      %p65 = por %p63, %p64
      %p66 = scmp.ne.s32.totalorder %s57, %s58
      %p67 = scmp.eq.s32.totalorder %s26, 0
      %p68 = por %p66, %p67
      %p69 = scmp.ne.s32.totalorder %s57, %s58
      %p70 = scmp.eq.s32.totalorder %s27, 3
      %p71 = por %p69, %p70
      %p73 = scmp.ne.s32.totalorder %s58, %s72
      %p74 = scmp.eq.s32.totalorder %s27, 0
      %p75 = por %p73, %p74
      %s77 = sadd.s32 %s76, 1
      %p80 = scmp.eq.s32.totalorder %s21, 3
      %p81 = scmp.ne.s32.totalorder %s76, %s78
      %p82 = scmp.eq.s32.totalorder %s21, 0
      %p83 = por %p81, %p82
      %p84 = scmp.ne.s32.totalorder %s76, %s78
      %p85 = scmp.eq.s32.totalorder %s26, 3
      %p86 = por %p84, %p85
      %p87 = scmp.ne.s32.totalorder %s78, %s79
      %p88 = scmp.eq.s32.totalorder %s26, 0
      %p89 = por %p87, %p88
      %p90 = scmp.ne.s32.totalorder %s78, %s79
      %p91 = scmp.eq.s32.totalorder %s27, 3
      %p92 = por %p90, %p91
      %p94 = scmp.ne.s32.totalorder %s79, %s93
      %p95 = scmp.eq.s32.totalorder %s27, 0
      %p96 = por %p94, %p95
      %s98 = sadd.s32 %s97, 1
      %p101 = scmp.eq.s32.totalorder %s21, 3
      %p102 = scmp.ne.s32.totalorder %s97, %s99
      %p103 = scmp.eq.s32.totalorder %s21, 0
      %p104 = por %p102, %p103
      %p105 = scmp.ne.s32.totalorder %s97, %s99
      %p106 = scmp.eq.s32.totalorder %s26, 3
      %p107 = por %p105, %p106
      %p108 = scmp.ne.s32.totalorder %s99, %s100
      %p109 = scmp.eq.s32.totalorder %s26, 0
      %p110 = por %p108, %p109
      %p111 = scmp.ne.s32.totalorder %s99, %s100
      %p112 = scmp.eq.s32.totalorder %s27, 3
      %p113 = por %p111, %p112
      %p115 = scmp.ne.s32.totalorder %s100, %s114
      %p116 = scmp.eq.s32.totalorder %s27, 0
      %p117 = por %p115, %p116
      %s119 = sadd.s32 %s118, 1
      %p122 = scmp.eq.s32.totalorder %s21, 3
      %p123 = scmp.ne.s32.totalorder %s118, %s120
      %p124 = scmp.eq.s32.totalorder %s21, 0
      %p125 = por %p123, %p124
      %p126 = scmp.ne.s32.totalorder %s118, %s120
      %p127 = scmp.eq.s32.totalorder %s26, 3
      %p128 = por %p126, %p127
      %p129 = scmp.ne.s32.totalorder %s120, %s121
      %p130 = scmp.eq.s32.totalorder %s26, 0
      %p131 = por %p129, %p130
      %p132 = scmp.ne.s32.totalorder %s120, %s121
      %p133 = scmp.eq.s32.totalorder %s27, 3
      %p134 = por %p132, %p133
      %p136 = scmp.ne.s32.totalorder %s121, %s135
      %p137 = scmp.eq.s32.totalorder %s27, 0
      %p138 = por %p136, %p137
      %s140 = sadd.s32 %s139, 1
      %p143 = scmp.eq.s32.totalorder %s21, 3
      %p144 = scmp.ne.s32.totalorder %s139, %s141
      %p145 = scmp.eq.s32.totalorder %s21, 0
      %p146 = por %p144, %p145
      %p147 = scmp.ne.s32.totalorder %s139, %s141
      %p148 = scmp.eq.s32.totalorder %s26, 3
      %p149 = por %p147, %p148
      %p150 = scmp.ne.s32.totalorder %s141, %s142
      %p151 = scmp.eq.s32.totalorder %s26, 0
      %p152 = por %p150, %p151
      %p153 = scmp.ne.s32.totalorder %s141, %s142
      %p154 = scmp.eq.s32.totalorder %s27, 3
      %p155 = por %p153, %p154
      %p157 = scmp.ne.s32.totalorder %s142, %s156
      %p158 = scmp.eq.s32.totalorder %s27, 0
      %p159 = por %p157, %p158
      %s161 = sadd.s32 %s160, 1
      %p164 = scmp.eq.s32.totalorder %s21, 3
      %p165 = scmp.ne.s32.totalorder %s160, %s162
      %p166 = scmp.eq.s32.totalorder %s21, 0
      %p167 = por %p165, %p166
      %p168 = scmp.ne.s32.totalorder %s160, %s162
      %p169 = scmp.eq.s32.totalorder %s26, 3
      %p170 = por %p168, %p169
      %p171 = scmp.ne.s32.totalorder %s162, %s163
      %p172 = scmp.eq.s32.totalorder %s26, 0
      %p173 = por %p171, %p172
      %p174 = scmp.ne.s32.totalorder %s162, %s163
      %p175 = scmp.eq.s32.totalorder %s27, 3
      %p176 = por %p174, %p175
      %p178 = scmp.ne.s32.totalorder %s163, %s177
      %p179 = scmp.eq.s32.totalorder %s27, 0
      %p180 = por %p178, %p179
      %s181 = ssub.s32 %s21, %s28
      %p182 = scmp.eq.s32.totalorder %s181, 0
      %s184 = sadd.s32 %s183, 1
      %s185 = scalar_select %p182, %s183, %s184
      %p188 = pneg %p182
      %p189 = scmp.eq.s32.totalorder %s21, 3
      %p190 = por %p188, %p189
      %p191 = scmp.ne.s32.totalorder %s183, %s186
      %p192 = scmp.eq.s32.totalorder %s21, 0
      %p193 = por %p191, %p192
      %p194 = scmp.ne.s32.totalorder %s183, %s186
      %p195 = scmp.eq.s32.totalorder %s26, 3
      %p196 = por %p194, %p195
      %p197 = scmp.ne.s32.totalorder %s186, %s187
      %p198 = scmp.eq.s32.totalorder %s26, 0
      %p199 = por %p197, %p198
      %p200 = scmp.ne.s32.totalorder %s186, %s187
      %p201 = scmp.eq.s32.totalorder %s27, 3
      %p202 = por %p200, %p201
      %p204 = scmp.ne.s32.totalorder %s187, %s203
      %p205 = scmp.eq.s32.totalorder %s27, 0
      %p206 = por %p204, %p205
      %p207 = scmp.le.s32.totalorder 1, %s21
      %p208 = scmp.lt.s32.totalorder %s21, 5
      %p209 = pnand %p207, %p208
      %p210 = pneg %p209
      // Predicated region
      $region9: #{tpu_custom_call.1} parent=5 // pred_check
        _
      $region10: #{tpu_custom_call.1} parent=5 // pred_check_branch
        %212 = sbr.rel (%p209) target = $region12
      $region11: #{tpu_custom_call.1} parent=5 // pred_region
        %s213 = ssub.s32 %s21, 1
        // Predicated region
        $region13: #{tpu_custom_call.1} parent=11 // pred_check
          %p214 = pneg %p68
        $region14: #{tpu_custom_call.1} parent=11 // pred_check_branch
          %216 = sbr.rel (%p214) target = $region16
        $region15: #{tpu_custom_call.1} parent=11 // pred_region
          %s218 = ssub.s32 2048, 2048
          %219 = vsyncadd [#allocation6], %s218
          %s220 = sshll.u32 [#allocation5], 4
          %s221 = int_to_ptr.vmem [resolvable:$true] %s220
          %226 = dma.hbm_to_vmem [thread:$0]  %s1, 2048, %s221, [#allocation6], 64, 64, 4
        $region16: #{tpu_custom_call.1} parent=11 // pred_fallthru
          _
        // Predicated region
        $region17: #{tpu_custom_call.1} parent=11 // pred_check
          %p227 = pneg %p89
        $region18: #{tpu_custom_call.1} parent=11 // pred_check_branch
          %229 = sbr.rel (%p227) target = $region20
        $region19: #{tpu_custom_call.1} parent=11 // pred_region
          _
        $region20: #{tpu_custom_call.1} parent=11 // pred_fallthru
          _
        // Predicated region
        $region21: #{tpu_custom_call.1} parent=11 // pred_check
          %p230 = pneg %p110
        $region22: #{tpu_custom_call.1} parent=11 // pred_check_branch
          %232 = sbr.rel (%p230) target = $region24
        $region23: #{tpu_custom_call.1} parent=11 // pred_region
          %s234 = ssub.s32 1024, 1024
          %235 = vsyncadd [#allocation6], %s234
          %s236 = sshll.u32 [#allocation7], 4
          %s237 = int_to_ptr.vmem [resolvable:$true] %s236
          %242 = dma.hbm_to_vmem [thread:$0]  %s3, 1024, %s237, [#allocation6], 64, 64, 4
        $region24: #{tpu_custom_call.1} parent=11 // pred_fallthru
          _
        // Predicated region
        $region25: #{tpu_custom_call.1} parent=11 // pred_check
          %p243 = pneg %p131
        $region26: #{tpu_custom_call.1} parent=11 // pred_check_branch
          %245 = sbr.rel (%p243) target = $region28
        $region27: #{tpu_custom_call.1} parent=11 // pred_region
          _
        $region28: #{tpu_custom_call.1} parent=11 // pred_fallthru
          _
        // Predicated region
        $region29: #{tpu_custom_call.1} parent=11 // pred_check
          %p246 = pneg %p152
        $region30: #{tpu_custom_call.1} parent=11 // pred_check_branch
          %248 = sbr.rel (%p246) target = $region32
        $region31: #{tpu_custom_call.1} parent=11 // pred_region
          %s250 = ssub.s32 1024, 1024
          %251 = vsyncadd [#allocation9], %s250
          %s252 = sshll.u32 [#allocation8], 4
          %s253 = int_to_ptr.vmem [resolvable:$true] %s252
          %258 = dma.hbm_to_vmem [thread:$0]  %s5, 1024, %s253, [#allocation9], 64, 64, 4
        $region32: #{tpu_custom_call.1} parent=11 // pred_fallthru
          _
        // Predicated region
        $region33: #{tpu_custom_call.1} parent=11 // pred_check
          %p259 = pneg %p173
        $region34: #{tpu_custom_call.1} parent=11 // pred_check_branch
          %261 = sbr.rel (%p259) target = $region36
        $region35: #{tpu_custom_call.1} parent=11 // pred_region
          _
        $region36: #{tpu_custom_call.1} parent=11 // pred_fallthru
          _
      $region12: #{tpu_custom_call.1} parent=5 // pred_fallthru
        _
      %p262 = scmp.lt.s32.totalorder %s21, 4
      // Predicated region
      $region37: #{tpu_custom_call.1} parent=5 // pred_check
        %p263 = pneg %p262
      $region38: #{tpu_custom_call.1} parent=5 // pred_check_branch
        %265 = sbr.rel (%p263) target = $region40
      $region39: #{tpu_custom_call.1} parent=5 // pred_region
        // Predicated region
        $region41: #{tpu_custom_call.1} parent=39 // pred_check
          %p266 = pneg %p41
        $region42: #{tpu_custom_call.1} parent=39 // pred_check_branch
          %268 = sbr.rel (%p266) target = $region44
        $region43: #{tpu_custom_call.1} parent=39 // pred_region
          %s269 = sand.u32 %s31, 1
          %s270 = scalar_lea.sflag [#allocation3], %s269
          %s271 = sand.u32 %s31, 1
          %s272 = smul.addr %s271, 256
          %s273 = scalar_lea.vmem [#allocation2], %s272
          %s274 = smul.u32 16, %s21
          %s275 = ssub.s32 63, %s274
          %p276 = scmp.lt.s32.totalorder %s275, 16
          %s277 = scalar_select %p276, %s275, 16
          %s278 = smul.u32 128, %s277
          %s279 = smul.u32 %s278, 2
          %s281 = ssub.s32 4096, %s279
          %282 = vsyncadd %s270, %s281
          %p283 = scmp.ne.s32.totalorder 0, %s279
          %s284 = smul.addr %s274, 2
          %s285 = smul.addr %s284, 128
          %s286 = scalar_lea.hbm %s0, %s285
          %s287 = smul.u32 16, %s277
          %s288 = sshll.u32 %s273, 4
          %s289 = int_to_ptr.vmem [resolvable:$true] %s288
          %s290 = sshll.u32 %s287, 4
          %294 = dma.hbm_to_vmem [thread:$0]  (%p283), %s286, %s290, %s289, %s270, 256, 256, 16
        $region44: #{tpu_custom_call.1} parent=39 // pred_fallthru
          _
      $region40: #{tpu_custom_call.1} parent=5 // pred_fallthru
        _
      %p295 = scmp.le.s32.totalorder 1, %s21
      %p296 = scmp.lt.s32.totalorder %s21, 5
      %p297 = pnand %p295, %p296
      %p298 = pneg %p297
      // Predicated region
      $region45: #{tpu_custom_call.1} parent=5 // pred_check
        _
      $region46: #{tpu_custom_call.1} parent=5 // pred_check_branch
        %300 = sbr.rel (%p297) target = $region48
      $region47: #{tpu_custom_call.1} parent=5 // pred_region
        %s301 = ssub.s32 %s21, 1
        %s302 = sand.u32 %s34, 1
        %s303 = scalar_lea.sflag [#allocation3], %s302
        %s304 = sand.u32 %s34, 1
        %s305 = smul.addr %s304, 256
        %s306 = scalar_lea.vmem [#allocation2], %s305
        // Predicated region
        $region49: #{tpu_custom_call.1} parent=47 // pred_check
          %p307 = pneg %p47
        $region50: #{tpu_custom_call.1} parent=47 // pred_check_branch
          %309 = sbr.rel (%p307) target = $region52
        $region51: #{tpu_custom_call.1} parent=47 // pred_region
          %310 = dma.done %s303, 4096
        $region52: #{tpu_custom_call.1} parent=47 // pred_fallthru
          _
        // Predicated region
        $region53: #{tpu_custom_call.1} parent=47 // pred_check
          %p311 = pneg %p68
        $region54: #{tpu_custom_call.1} parent=47 // pred_check_branch
          %313 = sbr.rel (%p311) target = $region56
        $region55: #{tpu_custom_call.1} parent=47 // pred_region
          %314 = dma.done [#allocation6], 2048
        $region56: #{tpu_custom_call.1} parent=47 // pred_fallthru
          _
        // Predicated region
        $region57: #{tpu_custom_call.1} parent=47 // pred_check
          %p315 = pneg %p110
        $region58: #{tpu_custom_call.1} parent=47 // pred_check_branch
          %317 = sbr.rel (%p315) target = $region60
        $region59: #{tpu_custom_call.1} parent=47 // pred_region
          %318 = dma.done [#allocation6], 1024
        $region60: #{tpu_custom_call.1} parent=47 // pred_fallthru
          _
        // Predicated region
        $region61: #{tpu_custom_call.1} parent=47 // pred_check
          %p319 = pneg %p152
        $region62: #{tpu_custom_call.1} parent=47 // pred_check_branch
          %321 = sbr.rel (%p319) target = $region64
        $region63: #{tpu_custom_call.1} parent=47 // pred_region
          %322 = dma.done [#allocation9], 1024
        $region64: #{tpu_custom_call.1} parent=47 // pred_fallthru
          _
        %s323 = sand.u32 %s34, 1
        %s324 = scalar_lea.sflag [#allocation3], %s323
        %s325 = sand.u32 %s34, 1
        %s326 = smul.addr %s325, 256
        %s327 = scalar_lea.vmem [#allocation2], %s326
        %p328 = pneg %p47
        %p329 = pneg %p44
        %p330 = pneg %p68
        %p331 = pneg %p65
        %p332 = pneg %p89
        %p333 = pneg %p86
        %p334 = pneg %p110
        %p335 = pneg %p107
        %p336 = pneg %p131
        %p337 = pneg %p128
        %p338 = pneg %p152
        %p339 = pneg %p149
        %p340 = pneg %p173
        %p341 = pneg %p170
        %p342 = pneg %p199
        %p343 = pneg %p196
        %s344 = sand.u32 %s186, 1
        %s345 = scalar_lea.sflag [#allocation4], %s344
        %s346 = sand.u32 %s186, 1
        %s347 = smul.addr %s346, 128
        %s348 = scalar_lea.vmem [#allocation10], %s347
        %s349 = smul.u32 16, %s26
        %s350 = ssub.s32 63, %s349
        %p351 = scmp.lt.s32.totalorder %s350, 16
        %s352 = scalar_select %p351, %s350, 16
        %s353 = smul.u32 128, %s352
        %s354 = smul.u32 %s353, 2
        %s355 = smul.u32 16, %s26
        %s356 = ssub.s32 63, %s355
        %p357 = scmp.lt.s32.totalorder %s356, 16
        %s358 = scalar_select %p357, %s356, 16
        %s359 = smul.u32 128, %s358
        %v361 = vld [vmem:[%s306] sm:$0xff]
        %v362 = vld [vmem:[%s306 + $0x8] sm:$0xff]
        %v363 = vld [vmem:[%s306 + $0x10] sm:$0xff]
        %v364 = vld [vmem:[%s306 + $0x18] sm:$0xff]
        %v365 = vld [vmem:[%s306 + $0x20] sm:$0xff]
        %v366 = vld [vmem:[%s306 + $0x28] sm:$0xff]
        %v367 = vld [vmem:[%s306 + $0x30] sm:$0xff]
        %v368 = vld [vmem:[%s306 + $0x38] sm:$0xff]
        %v369 = vld [vmem:[%s306 + $0x40] sm:$0xff]
        %v370 = vld [vmem:[%s306 + $0x48] sm:$0xff]
        %v371 = vld [vmem:[%s306 + $0x50] sm:$0xff]
        %v372 = vld [vmem:[%s306 + $0x58] sm:$0xff]
        %v373 = vld [vmem:[%s306 + $0x60] sm:$0xff]
        %v374 = vld [vmem:[%s306 + $0x68] sm:$0xff]
        %v375 = vld [vmem:[%s306 + $0x70] sm:$0xff]
        %v376 = vld [vmem:[%s306 + $0x78] sm:$0xff]
        %v377 = vld [vmem:[%s306 + $0x80] sm:$0xff]
        %v378 = vld [vmem:[%s306 + $0x88] sm:$0xff]
        %v379 = vld [vmem:[%s306 + $0x90] sm:$0xff]
        %v380 = vld [vmem:[%s306 + $0x98] sm:$0xff]
        %v381 = vld [vmem:[%s306 + $0xa0] sm:$0xff]
        %v382 = vld [vmem:[%s306 + $0xa8] sm:$0xff]
        %v383 = vld [vmem:[%s306 + $0xb0] sm:$0xff]
        %v384 = vld [vmem:[%s306 + $0xb8] sm:$0xff]
        %v385 = vld [vmem:[%s306 + $0xc0] sm:$0xff]
        %v386 = vld [vmem:[%s306 + $0xc8] sm:$0xff]
        %v387 = vld [vmem:[%s306 + $0xd0] sm:$0xff]
        %v388 = vld [vmem:[%s306 + $0xd8] sm:$0xff]
        %v389 = vld [vmem:[%s306 + $0xe0] sm:$0xff]
        %v390 = vld [vmem:[%s306 + $0xe8] sm:$0xff]
        %v391 = vld [vmem:[%s306 + $0xf0] sm:$0xff]
        %v392 = vld [vmem:[%s306 + $0xf8] sm:$0xff]
        %v393 = vpack.c.bf16 %v363, %v361
        %v394 = vpack.c.bf16 %v364, %v362
        %v395 = vpack.c.bf16 %v367, %v365
        %v396 = vpack.c.bf16 %v368, %v366
        %v397 = vpack.c.bf16 %v371, %v369
        %v398 = vpack.c.bf16 %v372, %v370
        %v399 = vpack.c.bf16 %v375, %v373
        %v400 = vpack.c.bf16 %v376, %v374
        %v401 = vpack.c.bf16 %v379, %v377
        %v402 = vpack.c.bf16 %v380, %v378
        %v403 = vpack.c.bf16 %v383, %v381
        %v404 = vpack.c.bf16 %v384, %v382
        %v405 = vpack.c.bf16 %v387, %v385
        %v406 = vpack.c.bf16 %v388, %v386
        %v407 = vpack.c.bf16 %v391, %v389
        %v408 = vpack.c.bf16 %v392, %v390
        %v409 = vld [vmem:[#allocation5] sm:$0xf]
        %v410 = vld [vmem:[#allocation5 + $0x4] sm:$0xf]
        %v411 = vld [vmem:[#allocation5 + $0x8] sm:$0xf]
        %v412 = vld [vmem:[#allocation5 + $0xc] sm:$0xf]
        %v413 = vld [vmem:[#allocation5 + $0x10] sm:$0xf]
        %v414 = vld [vmem:[#allocation5 + $0x14] sm:$0xf]
        %v415 = vld [vmem:[#allocation5 + $0x18] sm:$0xf]
        %v416 = vld [vmem:[#allocation5 + $0x1c] sm:$0xf]
        %v417 = vld [vmem:[#allocation5 + $0x20] sm:$0xf]
        %v418 = vld [vmem:[#allocation5 + $0x24] sm:$0xf]
        %v419 = vld [vmem:[#allocation5 + $0x28] sm:$0xf]
        %v420 = vld [vmem:[#allocation5 + $0x2c] sm:$0xf]
        %v421 = vld [vmem:[#allocation5 + $0x30] sm:$0xf]
        %v422 = vld [vmem:[#allocation5 + $0x34] sm:$0xf]
        %v423 = vld [vmem:[#allocation5 + $0x38] sm:$0xf]
        %v424 = vld [vmem:[#allocation5 + $0x3c] sm:$0xf]
        %v425 = vld [vmem:[#allocation5 + $0x40] sm:$0xf]
        %v426 = vld [vmem:[#allocation5 + $0x44] sm:$0xf]
        %v427 = vld [vmem:[#allocation5 + $0x48] sm:$0xf]
        %v428 = vld [vmem:[#allocation5 + $0x4c] sm:$0xf]
        %v429 = vld [vmem:[#allocation5 + $0x50] sm:$0xf]
        %v430 = vld [vmem:[#allocation5 + $0x54] sm:$0xf]
        %v431 = vld [vmem:[#allocation5 + $0x58] sm:$0xf]
        %v432 = vld [vmem:[#allocation5 + $0x5c] sm:$0xf]
        %v433 = vld [vmem:[#allocation5 + $0x60] sm:$0xf]
        %v434 = vld [vmem:[#allocation5 + $0x64] sm:$0xf]
        %v435 = vld [vmem:[#allocation5 + $0x68] sm:$0xf]
        %v436 = vld [vmem:[#allocation5 + $0x6c] sm:$0xf]
        %v437 = vld [vmem:[#allocation5 + $0x70] sm:$0xf]
        %v438 = vld [vmem:[#allocation5 + $0x74] sm:$0xf]
        %v439 = vld [vmem:[#allocation5 + $0x78] sm:$0xf]
        %v440 = vld [vmem:[#allocation5 + $0x7c] sm:$0xf]
        %v441 = vld [vmem:[%s2] sm:$0x1]
        %v443 = vlaneseq
        %v444 = vshrl.u32 %v443, 7
        %v445 = vsub.s32 0, %v444
        %v446 = vrot.slane %v441, %v445
        %v480 = vunpack.c.l.b16 %v409
        %v481 = vunpack.c.l.b16 %v410
        %v482 = vunpack.c.l.b16 %v411
        %v483 = vunpack.c.l.b16 %v412
        %v484 = vunpack.c.l.b16 %v413
        %v485 = vunpack.c.l.b16 %v414
        %v486 = vunpack.c.l.b16 %v415
        %v487 = vunpack.c.l.b16 %v416
        %v488 = vunpack.c.l.b16 %v417
        %v489 = vunpack.c.l.b16 %v418
        %v490 = vunpack.c.l.b16 %v419
        %v491 = vunpack.c.l.b16 %v420
        %v492 = vunpack.c.l.b16 %v421
        %v493 = vunpack.c.l.b16 %v422
        %v494 = vunpack.c.l.b16 %v423
        %v495 = vunpack.c.l.b16 %v424
        %v496 = vunpack.c.l.b16 %v425
        %v497 = vunpack.c.l.b16 %v426
        %v498 = vunpack.c.l.b16 %v427
        %v499 = vunpack.c.l.b16 %v428
        %v500 = vunpack.c.l.b16 %v429
        %v501 = vunpack.c.l.b16 %v430
        %v502 = vunpack.c.l.b16 %v431
        %v503 = vunpack.c.l.b16 %v432
        %v504 = vunpack.c.l.b16 %v433
        %v505 = vunpack.c.l.b16 %v434
        %v506 = vunpack.c.l.b16 %v435
        %v507 = vunpack.c.l.b16 %v436
        %v508 = vunpack.c.l.b16 %v437
        %v509 = vunpack.c.l.b16 %v438
        %v510 = vunpack.c.l.b16 %v439
        %v511 = vunpack.c.l.b16 %v440
        %v512 = vpack.c.b16 %v481, %v480
        %v513 = vpack.c.b16 %v483, %v482
        %v514 = vpack.c.b16 %v485, %v484
        %v515 = vpack.c.b16 %v487, %v486
        %v516 = vpack.c.b16 %v489, %v488
        %v517 = vpack.c.b16 %v491, %v490
        %v518 = vpack.c.b16 %v493, %v492
        %v519 = vpack.c.b16 %v495, %v494
        %v520 = vpack.c.b16 %v497, %v496
        %v521 = vpack.c.b16 %v499, %v498
        %v522 = vpack.c.b16 %v501, %v500
        %v523 = vpack.c.b16 %v503, %v502
        %v524 = vpack.c.b16 %v505, %v504
        %v525 = vpack.c.b16 %v507, %v506
        %v526 = vpack.c.b16 %v509, %v508
        %v527 = vpack.c.b16 %v511, %v510
        %544 = vmatprep.subr.bf16.mxu0 0
        %545 = vmatpush1.bf16.msra.mxu0 %v512
        %546 = vmatprep.subr.bf16.mxu0 0
        %547 = vmatpush1.bf16.msra.mxu0 %v513
        %548 = vmatprep.subr.bf16.mxu0 0
        %549 = vmatpush1.bf16.msra.mxu0 %v514
        %550 = vmatprep.subr.bf16.mxu0 0
        %551 = vmatpush1.bf16.msra.mxu0 %v515
        %552 = vmatprep.subr.bf16.mxu0 0
        %553 = vmatpush1.bf16.msra.mxu0 %v516
        %554 = vmatprep.subr.bf16.mxu0 0
        %555 = vmatpush1.bf16.msra.mxu0 %v517
        %556 = vmatprep.subr.bf16.mxu0 0
        %557 = vmatpush1.bf16.msra.mxu0 %v518
        %558 = vmatprep.subr.bf16.mxu0 0
        %559 = vmatpush1.bf16.msra.mxu0 %v519
        %560 = vmatprep.subr.bf16.mxu0 0
        %561 = vmatpush1.bf16.msra.mxu0 %v520
        %562 = vmatprep.subr.bf16.mxu0 0
        %563 = vmatpush1.bf16.msra.mxu0 %v521
        %564 = vmatprep.subr.bf16.mxu0 0
        %565 = vmatpush1.bf16.msra.mxu0 %v522
        %566 = vmatprep.subr.bf16.mxu0 0
        %567 = vmatpush1.bf16.msra.mxu0 %v523
        %568 = vmatprep.subr.bf16.mxu0 0
        %569 = vmatpush1.bf16.msra.mxu0 %v524
        %570 = vmatprep.subr.bf16.mxu0 0
        %571 = vmatpush1.bf16.msra.mxu0 %v525
        %572 = vmatprep.subr.bf16.mxu0 0
        %573 = vmatpush1.bf16.msra.mxu0 %v526
        %574 = vmatprep.subr.bf16.mxu0 0
        %575 = vmatpush1.bf16.msra.mxu0 %v527
        %576 = vmatprep.mubr.bf16.mxu0 %v394
        %577 = vmatmul.mubr.bf16.gmra.mrb[0].mxu0 %v393
        %v578 = vpop.f32.mrb[0].mxu0
        %v579 = vadd.f32 %v446, %v578
        %v580 = vpop.f32.mrb[0].mxu0
        %v581 = vpop.f32.mrb[0].mxu0
        %v582 = vadd.f32 %v446, %v581
        %v583 = vpop.f32.mrb[0].mxu0
        %584 = vmatprep.mubr.bf16.mxu0 %v396
        %585 = vmatmul.mubr.bf16.gmra.mrb[0].mxu0 %v395
        %v586 = vpop.f32.mrb[0].mxu0
        %v587 = vadd.f32 %v446, %v586
        %v588 = vpop.f32.mrb[0].mxu0
        %v589 = vpop.f32.mrb[0].mxu0
        %v590 = vadd.f32 %v446, %v589
        %v591 = vpop.f32.mrb[0].mxu0
        %592 = vmatprep.mubr.bf16.mxu0 %v398
        %593 = vmatmul.mubr.bf16.gmra.mrb[0].mxu0 %v397
        %v594 = vpop.f32.mrb[0].mxu0
        %v595 = vadd.f32 %v446, %v594
        %v596 = vpop.f32.mrb[0].mxu0
        %v597 = vpop.f32.mrb[0].mxu0
        %v598 = vadd.f32 %v446, %v597
        %v599 = vpop.f32.mrb[0].mxu0
        %600 = vmatprep.mubr.bf16.mxu0 %v400
        %601 = vmatmul.mubr.bf16.gmra.mrb[0].mxu0 %v399
        %v602 = vpop.f32.mrb[0].mxu0
        %v603 = vadd.f32 %v446, %v602
        %v604 = vpop.f32.mrb[0].mxu0
        %v605 = vpop.f32.mrb[0].mxu0
        %v606 = vadd.f32 %v446, %v605
        %v607 = vpop.f32.mrb[0].mxu0
        %608 = vmatprep.mubr.bf16.mxu0 %v402
        %609 = vmatmul.mubr.bf16.gmra.mrb[0].mxu0 %v401
        %v610 = vpop.f32.mrb[0].mxu0
        %v611 = vadd.f32 %v446, %v610
        %v612 = vpop.f32.mrb[0].mxu0
        %v613 = vpop.f32.mrb[0].mxu0
        %v614 = vadd.f32 %v446, %v613
        %v615 = vpop.f32.mrb[0].mxu0
        %616 = vmatprep.mubr.bf16.mxu0 %v404
        %617 = vmatmul.mubr.bf16.gmra.mrb[0].mxu0 %v403
        %v618 = vpop.f32.mrb[0].mxu0
        %v619 = vadd.f32 %v446, %v618
        %v620 = vpop.f32.mrb[0].mxu0
        %v621 = vpop.f32.mrb[0].mxu0
        %v622 = vadd.f32 %v446, %v621
        %v623 = vpop.f32.mrb[0].mxu0
        %624 = vmatprep.mubr.bf16.mxu0 %v406
        %625 = vmatmul.mubr.bf16.gmra.mrb[0].mxu0 %v405
        %v626 = vpop.f32.mrb[0].mxu0
        %v627 = vadd.f32 %v446, %v626
        %v628 = vpop.f32.mrb[0].mxu0
        %v629 = vpop.f32.mrb[0].mxu0
        %v630 = vadd.f32 %v446, %v629
        %v631 = vpop.f32.mrb[0].mxu0
        %632 = vmatprep.mubr.bf16.mxu0 %v408
        %633 = vmatmul.mubr.bf16.gmra.mrb[0].mxu0 %v407
        %v634 = vpop.f32.mrb[0].mxu0
        %v635 = vadd.f32 %v446, %v634
        %v636 = vpop.f32.mrb[0].mxu0
        %v637 = vpop.f32.mrb[0].mxu0
        %v638 = vadd.f32 %v446, %v637
        %v639 = vpop.f32.mrb[0].mxu0
        %640 = vdwg.mxu0
        %v641 = vmax.f32 %v579, 0.0
        %v642 = vmax.f32 %v582, 0.0
        %v643 = vmax.f32 %v587, 0.0
        %v644 = vmax.f32 %v590, 0.0
        %v645 = vmax.f32 %v595, 0.0
        %v646 = vmax.f32 %v598, 0.0
        %v647 = vmax.f32 %v603, 0.0
        %v648 = vmax.f32 %v606, 0.0
        %v649 = vmax.f32 %v611, 0.0
        %v650 = vmax.f32 %v614, 0.0
        %v651 = vmax.f32 %v619, 0.0
        %v652 = vmax.f32 %v622, 0.0
        %v653 = vmax.f32 %v627, 0.0
        %v654 = vmax.f32 %v630, 0.0
        %v655 = vmax.f32 %v635, 0.0
        %v656 = vmax.f32 %v638, 0.0
        %v657 = vpack.c.bf16 %v642, %v641
        %v658 = vpack.c.bf16 %v644, %v643
        %v659 = vpack.c.bf16 %v646, %v645
        %v660 = vpack.c.bf16 %v648, %v647
        %v661 = vpack.c.bf16 %v650, %v649
        %v662 = vpack.c.bf16 %v652, %v651
        %v663 = vpack.c.bf16 %v654, %v653
        %v664 = vpack.c.bf16 %v656, %v655
        %v665 = vld [vmem:[#allocation7] sm:$0xf]
        %v666 = vld [vmem:[#allocation7 + $0x4] sm:$0xf]
        %v667 = vld [vmem:[#allocation7 + $0x8] sm:$0xf]
        %v668 = vld [vmem:[#allocation7 + $0xc] sm:$0xf]
        %v669 = vld [vmem:[#allocation7 + $0x10] sm:$0xf]
        %v670 = vld [vmem:[#allocation7 + $0x14] sm:$0xf]
        %v671 = vld [vmem:[#allocation7 + $0x18] sm:$0xf]
        %v672 = vld [vmem:[#allocation7 + $0x1c] sm:$0xf]
        %v673 = vld [vmem:[#allocation7 + $0x20] sm:$0xf]
        %v674 = vld [vmem:[#allocation7 + $0x24] sm:$0xf]
        %v675 = vld [vmem:[#allocation7 + $0x28] sm:$0xf]
        %v676 = vld [vmem:[#allocation7 + $0x2c] sm:$0xf]
        %v677 = vld [vmem:[#allocation7 + $0x30] sm:$0xf]
        %v678 = vld [vmem:[#allocation7 + $0x34] sm:$0xf]
        %v679 = vld [vmem:[#allocation7 + $0x38] sm:$0xf]
        %v680 = vld [vmem:[#allocation7 + $0x3c] sm:$0xf]
        %v681 = vld [vmem:[%s4] sm:$0x1]
        %v683 = vlaneseq
        %v684 = vshrl.u32 %v683, 7
        %v685 = vsub.s32 0, %v684
        %v686 = vrot.slane %v681, %v685
        %v704 = vunpack.c.l.b16 %v665
        %v705 = vunpack.c.l.b16 %v666
        %v706 = vunpack.c.l.b16 %v667
        %v707 = vunpack.c.l.b16 %v668
        %v708 = vunpack.c.l.b16 %v669
        %v709 = vunpack.c.l.b16 %v670
        %v710 = vunpack.c.l.b16 %v671
        %v711 = vunpack.c.l.b16 %v672
        %v712 = vunpack.c.l.b16 %v673
        %v713 = vunpack.c.l.b16 %v674
        %v714 = vunpack.c.l.b16 %v675
        %v715 = vunpack.c.l.b16 %v676
        %v716 = vunpack.c.l.b16 %v677
        %v717 = vunpack.c.l.b16 %v678
        %v718 = vunpack.c.l.b16 %v679
        %v719 = vunpack.c.l.b16 %v680
        %v720 = vpack.c.b16 %v705, %v704
        %v721 = vpack.c.b16 %v707, %v706
        %v722 = vpack.c.b16 %v709, %v708
        %v723 = vpack.c.b16 %v711, %v710
        %v724 = vpack.c.b16 %v713, %v712
        %v725 = vpack.c.b16 %v715, %v714
        %v726 = vpack.c.b16 %v717, %v716
        %v727 = vpack.c.b16 %v719, %v718
        %736 = vmatprep.subr.bf16.mxu0 0
        %737 = vmatpush1.bf16.msra.mxu0 %v720
        %738 = vmatprep.subr.bf16.mxu0 0
        %739 = vmatpush1.bf16.msra.mxu0 %v721
        %740 = vmatprep.subr.bf16.mxu0 0
        %741 = vmatpush1.bf16.msra.mxu0 %v722
        %742 = vmatprep.subr.bf16.mxu0 0
        %743 = vmatpush1.bf16.msra.mxu0 %v723
        %744 = vmatprep.subr.bf16.mxu0 0
        %745 = vmatpush1.bf16.msra.mxu0 %v724
        %746 = vmatprep.subr.bf16.mxu0 0
        %747 = vmatpush1.bf16.msra.mxu0 %v725
        %748 = vmatprep.subr.bf16.mxu0 0
        %749 = vmatpush1.bf16.msra.mxu0 %v726
        %750 = vmatprep.subr.bf16.mxu0 0
        %751 = vmatpush1.bf16.msra.mxu0 %v727
        %752 = vmatprep.subr.bf16.mxu0 0
        %753 = vmatpush1.bf16.msra.mxu0 0
        %754 = vmatprep.subr.bf16.mxu0 0
        %755 = vmatpush1.bf16.msra.mxu0 0
        %756 = vmatprep.subr.bf16.mxu0 0
        %757 = vmatpush1.bf16.msra.mxu0 0
        %758 = vmatprep.subr.bf16.mxu0 0
        %759 = vmatpush1.bf16.msra.mxu0 0
        %760 = vmatprep.subr.bf16.mxu0 0
        %761 = vmatpush1.bf16.msra.mxu0 0
        %762 = vmatprep.subr.bf16.mxu0 0
        %763 = vmatpush1.bf16.msra.mxu0 0
        %764 = vmatprep.subr.bf16.mxu0 0
        %765 = vmatpush1.bf16.msra.mxu0 0
        %766 = vmatprep.subr.bf16.mxu0 0
        %767 = vmatpush1.bf16.msra.mxu0 0
        %768 = vmatprep.mubr.bf16.mxu0 0
        %769 = vmatmul.mubr.bf16.gmra.mrb[0].mxu0 %v657
        %v770 = vpop.f32.mrb[0].mxu0
        %v771 = vadd.f32 %v686, %v770
        %v772 = vpop.f32.mrb[0].mxu0
        %v773 = vpop.f32.mrb[0].mxu0
        %v774 = vadd.f32 %v686, %v773
        %v775 = vpop.f32.mrb[0].mxu0
        %776 = vmatprep.mubr.bf16.mxu0 0
        %777 = vmatmul.mubr.bf16.gmra.mrb[0].mxu0 %v658
        %v778 = vpop.f32.mrb[0].mxu0
        %v779 = vadd.f32 %v686, %v778
        %v780 = vpop.f32.mrb[0].mxu0
        %v781 = vpop.f32.mrb[0].mxu0
        %v782 = vadd.f32 %v686, %v781
        %v783 = vpop.f32.mrb[0].mxu0
        %784 = vmatprep.mubr.bf16.mxu0 0
        %785 = vmatmul.mubr.bf16.gmra.mrb[0].mxu0 %v659
        %v786 = vpop.f32.mrb[0].mxu0
        %v787 = vadd.f32 %v686, %v786
        %v788 = vpop.f32.mrb[0].mxu0
        %v789 = vpop.f32.mrb[0].mxu0
        %v790 = vadd.f32 %v686, %v789
        %v791 = vpop.f32.mrb[0].mxu0
        %792 = vmatprep.mubr.bf16.mxu0 0
        %793 = vmatmul.mubr.bf16.gmra.mrb[0].mxu0 %v660
        %v794 = vpop.f32.mrb[0].mxu0
        %v795 = vadd.f32 %v686, %v794
        %v796 = vpop.f32.mrb[0].mxu0
        %v797 = vpop.f32.mrb[0].mxu0
        %v798 = vadd.f32 %v686, %v797
        %v799 = vpop.f32.mrb[0].mxu0
        %800 = vmatprep.mubr.bf16.mxu0 0
        %801 = vmatmul.mubr.bf16.gmra.mrb[0].mxu0 %v661
        %v802 = vpop.f32.mrb[0].mxu0
        %v803 = vadd.f32 %v686, %v802
        %v804 = vpop.f32.mrb[0].mxu0
        %v805 = vpop.f32.mrb[0].mxu0
        %v806 = vadd.f32 %v686, %v805
        %v807 = vpop.f32.mrb[0].mxu0
        %808 = vmatprep.mubr.bf16.mxu0 0
        %809 = vmatmul.mubr.bf16.gmra.mrb[0].mxu0 %v662
        %v810 = vpop.f32.mrb[0].mxu0
        %v811 = vadd.f32 %v686, %v810
        %v812 = vpop.f32.mrb[0].mxu0
        %v813 = vpop.f32.mrb[0].mxu0
        %v814 = vadd.f32 %v686, %v813
        %v815 = vpop.f32.mrb[0].mxu0
        %816 = vmatprep.mubr.bf16.mxu0 0
        %817 = vmatmul.mubr.bf16.gmra.mrb[0].mxu0 %v663
        %v818 = vpop.f32.mrb[0].mxu0
        %v819 = vadd.f32 %v686, %v818
        %v820 = vpop.f32.mrb[0].mxu0
        %v821 = vpop.f32.mrb[0].mxu0
        %v822 = vadd.f32 %v686, %v821
        %v823 = vpop.f32.mrb[0].mxu0
        %824 = vmatprep.mubr.bf16.mxu0 0
        %825 = vmatmul.mubr.bf16.gmra.mrb[0].mxu0 %v664
        %v826 = vpop.f32.mrb[0].mxu0
        %v827 = vadd.f32 %v686, %v826
        %v828 = vpop.f32.mrb[0].mxu0
        %v829 = vpop.f32.mrb[0].mxu0
        %v830 = vadd.f32 %v686, %v829
        %v831 = vpop.f32.mrb[0].mxu0
        %832 = vdwg.mxu0
        %v833 = vmax.f32 %v771, 0.0
        %v834 = vmax.f32 %v774, 0.0
        %v835 = vmax.f32 %v779, 0.0
        %v836 = vmax.f32 %v782, 0.0
        %v837 = vmax.f32 %v787, 0.0
        %v838 = vmax.f32 %v790, 0.0
        %v839 = vmax.f32 %v795, 0.0
        %v840 = vmax.f32 %v798, 0.0
        %v841 = vmax.f32 %v803, 0.0
        %v842 = vmax.f32 %v806, 0.0
        %v843 = vmax.f32 %v811, 0.0
        %v844 = vmax.f32 %v814, 0.0
        %v845 = vmax.f32 %v819, 0.0
        %v846 = vmax.f32 %v822, 0.0
        %v847 = vmax.f32 %v827, 0.0
        %v848 = vmax.f32 %v830, 0.0
        %v849 = vpack.c.bf16 %v834, %v833
        %v850 = vpack.c.bf16 %v836, %v835
        %v851 = vpack.c.bf16 %v838, %v837
        %v852 = vpack.c.bf16 %v840, %v839
        %v853 = vpack.c.bf16 %v842, %v841
        %v854 = vpack.c.bf16 %v844, %v843
        %v855 = vpack.c.bf16 %v846, %v845
        %v856 = vpack.c.bf16 %v848, %v847
        %v857 = vld [vmem:[#allocation8] sm:$0xf]
        %v858 = vld [vmem:[#allocation8 + $0x4] sm:$0xf]
        %v859 = vld [vmem:[#allocation8 + $0x8] sm:$0xf]
        %v860 = vld [vmem:[#allocation8 + $0xc] sm:$0xf]
        %v861 = vld [vmem:[#allocation8 + $0x10] sm:$0xf]
        %v862 = vld [vmem:[#allocation8 + $0x14] sm:$0xf]
        %v863 = vld [vmem:[#allocation8 + $0x18] sm:$0xf]
        %v864 = vld [vmem:[#allocation8 + $0x1c] sm:$0xf]
        %v865 = vld [vmem:[#allocation8 + $0x20] sm:$0xf]
        %v866 = vld [vmem:[#allocation8 + $0x24] sm:$0xf]
        %v867 = vld [vmem:[#allocation8 + $0x28] sm:$0xf]
        %v868 = vld [vmem:[#allocation8 + $0x2c] sm:$0xf]
        %v869 = vld [vmem:[#allocation8 + $0x30] sm:$0xf]
        %v870 = vld [vmem:[#allocation8 + $0x34] sm:$0xf]
        %v871 = vld [vmem:[#allocation8 + $0x38] sm:$0xf]
        %v872 = vld [vmem:[#allocation8 + $0x3c] sm:$0xf]
        %v873 = vld [vmem:[%s6] sm:$0x1]
        %v875 = vlaneseq
        %v876 = vshrl.u32 %v875, 7
        %v877 = vsub.s32 0, %v876
        %v878 = vrot.slane %v873, %v877
        %v896 = vunpack.c.l.b16 %v857
        %v897 = vunpack.c.l.b16 %v858
        %v898 = vunpack.c.l.b16 %v859
        %v899 = vunpack.c.l.b16 %v860
        %v900 = vunpack.c.l.b16 %v861
        %v901 = vunpack.c.l.b16 %v862
        %v902 = vunpack.c.l.b16 %v863
        %v903 = vunpack.c.l.b16 %v864
        %v904 = vunpack.c.l.b16 %v865
        %v905 = vunpack.c.l.b16 %v866
        %v906 = vunpack.c.l.b16 %v867
        %v907 = vunpack.c.l.b16 %v868
        %v908 = vunpack.c.l.b16 %v869
        %v909 = vunpack.c.l.b16 %v870
        %v910 = vunpack.c.l.b16 %v871
        %v911 = vunpack.c.l.b16 %v872
        %v912 = vpack.c.b16 %v897, %v896
        %v913 = vpack.c.b16 %v899, %v898
        %v914 = vpack.c.b16 %v901, %v900
        %v915 = vpack.c.b16 %v903, %v902
        %v916 = vpack.c.b16 %v905, %v904
        %v917 = vpack.c.b16 %v907, %v906
        %v918 = vpack.c.b16 %v909, %v908
        %v919 = vpack.c.b16 %v911, %v910
        %928 = vmatprep.subr.bf16.mxu0 0
        %929 = vmatpush1.bf16.msra.mxu0 %v912
        %930 = vmatprep.subr.bf16.mxu0 0
        %931 = vmatpush1.bf16.msra.mxu0 %v913
        %932 = vmatprep.subr.bf16.mxu0 0
        %933 = vmatpush1.bf16.msra.mxu0 %v914
        %934 = vmatprep.subr.bf16.mxu0 0
        %935 = vmatpush1.bf16.msra.mxu0 %v915
        %936 = vmatprep.subr.bf16.mxu0 0
        %937 = vmatpush1.bf16.msra.mxu0 %v916
        %938 = vmatprep.subr.bf16.mxu0 0
        %939 = vmatpush1.bf16.msra.mxu0 %v917
        %940 = vmatprep.subr.bf16.mxu0 0
        %941 = vmatpush1.bf16.msra.mxu0 %v918
        %942 = vmatprep.subr.bf16.mxu0 0
        %943 = vmatpush1.bf16.msra.mxu0 %v919
        %944 = vmatprep.subr.bf16.mxu0 0
        %945 = vmatpush1.bf16.msra.mxu0 0
        %946 = vmatprep.subr.bf16.mxu0 0
        %947 = vmatpush1.bf16.msra.mxu0 0
        %948 = vmatprep.subr.bf16.mxu0 0
        %949 = vmatpush1.bf16.msra.mxu0 0
        %950 = vmatprep.subr.bf16.mxu0 0
        %951 = vmatpush1.bf16.msra.mxu0 0
        %952 = vmatprep.subr.bf16.mxu0 0
        %953 = vmatpush1.bf16.msra.mxu0 0
        %954 = vmatprep.subr.bf16.mxu0 0
        %955 = vmatpush1.bf16.msra.mxu0 0
        %956 = vmatprep.subr.bf16.mxu0 0
        %957 = vmatpush1.bf16.msra.mxu0 0
        %958 = vmatprep.subr.bf16.mxu0 0
        %959 = vmatpush1.bf16.msra.mxu0 0
        %960 = vmatprep.mubr.bf16.mxu0 0
        %961 = vmatmul.mubr.bf16.gmra.mrb[0].mxu0 %v849
        %v962 = vpop.f32.mrb[0].mxu0
        %v963 = vadd.f32 %v878, %v962
        %v964 = vpop.f32.mrb[0].mxu0
        %v965 = vpop.f32.mrb[0].mxu0
        %v966 = vadd.f32 %v878, %v965
        %v967 = vpop.f32.mrb[0].mxu0
        %968 = vmatprep.mubr.bf16.mxu0 0
        %969 = vmatmul.mubr.bf16.gmra.mrb[0].mxu0 %v850
        %v970 = vpop.f32.mrb[0].mxu0
        %v971 = vadd.f32 %v878, %v970
        %v972 = vpop.f32.mrb[0].mxu0
        %v973 = vpop.f32.mrb[0].mxu0
        %v974 = vadd.f32 %v878, %v973
        %v975 = vpop.f32.mrb[0].mxu0
        %976 = vmatprep.mubr.bf16.mxu0 0
        %977 = vmatmul.mubr.bf16.gmra.mrb[0].mxu0 %v851
        %v978 = vpop.f32.mrb[0].mxu0
        %v979 = vadd.f32 %v878, %v978
        %v980 = vpop.f32.mrb[0].mxu0
        %v981 = vpop.f32.mrb[0].mxu0
        %v982 = vadd.f32 %v878, %v981
        %v983 = vpop.f32.mrb[0].mxu0
        %984 = vmatprep.mubr.bf16.mxu0 0
        %985 = vmatmul.mubr.bf16.gmra.mrb[0].mxu0 %v852
        %v986 = vpop.f32.mrb[0].mxu0
        %v987 = vadd.f32 %v878, %v986
        %v988 = vpop.f32.mrb[0].mxu0
        %v989 = vpop.f32.mrb[0].mxu0
        %v990 = vadd.f32 %v878, %v989
        %v991 = vpop.f32.mrb[0].mxu0
        %992 = vmatprep.mubr.bf16.mxu0 0
        %993 = vmatmul.mubr.bf16.gmra.mrb[0].mxu0 %v853
        %v994 = vpop.f32.mrb[0].mxu0
        %v995 = vadd.f32 %v878, %v994
        %v996 = vpop.f32.mrb[0].mxu0
        %v997 = vpop.f32.mrb[0].mxu0
        %v998 = vadd.f32 %v878, %v997
        %v999 = vpop.f32.mrb[0].mxu0
        %1000 = vmatprep.mubr.bf16.mxu0 0
        %1001 = vmatmul.mubr.bf16.gmra.mrb[0].mxu0 %v854
        %v1002 = vpop.f32.mrb[0].mxu0
        %v1003 = vadd.f32 %v878, %v1002
        %v1004 = vpop.f32.mrb[0].mxu0
        %v1005 = vpop.f32.mrb[0].mxu0
        %v1006 = vadd.f32 %v878, %v1005
        %v1007 = vpop.f32.mrb[0].mxu0
        %1008 = vmatprep.mubr.bf16.mxu0 0
        %1009 = vmatmul.mubr.bf16.gmra.mrb[0].mxu0 %v855
        %v1010 = vpop.f32.mrb[0].mxu0
        %v1011 = vadd.f32 %v878, %v1010
        %v1012 = vpop.f32.mrb[0].mxu0
        %v1013 = vpop.f32.mrb[0].mxu0
        %v1014 = vadd.f32 %v878, %v1013
        %v1015 = vpop.f32.mrb[0].mxu0
        %1016 = vmatprep.mubr.bf16.mxu0 0
        %1017 = vmatmul.mubr.bf16.gmra.mrb[0].mxu0 %v856
        %v1018 = vpop.f32.mrb[0].mxu0
        %v1019 = vadd.f32 %v878, %v1018
        %v1020 = vpop.f32.mrb[0].mxu0
        %v1021 = vpop.f32.mrb[0].mxu0
        %v1022 = vadd.f32 %v878, %v1021
        %v1023 = vpop.f32.mrb[0].mxu0
        %1024 = vdwg.mxu0
        %1025 = vmax.xlane.f32.xlu0 %v963
        %v1026 = vpop.xlane.xlu0 %1025
        %1027 = vmax.xlane.f32.xlu0 %v966
        %v1028 = vpop.xlane.xlu0 %1027
        %1029 = vmax.xlane.f32.xlu0 %v971
        %v1030 = vpop.xlane.xlu0 %1029
        %1031 = vmax.xlane.f32.xlu0 %v974
        %v1032 = vpop.xlane.xlu0 %1031
        %1033 = vmax.xlane.f32.xlu0 %v979
        %v1034 = vpop.xlane.xlu0 %1033
        %1035 = vmax.xlane.f32.xlu0 %v982
        %v1036 = vpop.xlane.xlu0 %1035
        %1037 = vmax.xlane.f32.xlu0 %v987
        %v1038 = vpop.xlane.xlu0 %1037
        %1039 = vmax.xlane.f32.xlu0 %v990
        %v1040 = vpop.xlane.xlu0 %1039
        %1041 = vmax.xlane.f32.xlu0 %v995
        %v1042 = vpop.xlane.xlu0 %1041
        %1043 = vmax.xlane.f32.xlu0 %v998
        %v1044 = vpop.xlane.xlu0 %1043
        %1045 = vmax.xlane.f32.xlu0 %v1003
        %v1046 = vpop.xlane.xlu0 %1045
        %1047 = vmax.xlane.f32.xlu0 %v1006
        %v1048 = vpop.xlane.xlu0 %1047
        %1049 = vmax.xlane.f32.xlu0 %v1011
        %v1050 = vpop.xlane.xlu0 %1049
        %1051 = vmax.xlane.f32.xlu0 %v1014
        %v1052 = vpop.xlane.xlu0 %1051
        %1053 = vmax.xlane.f32.xlu0 %v1019
        %v1054 = vpop.xlane.xlu0 %1053
        %1055 = vmax.xlane.f32.xlu0 %v1022
        %v1056 = vpop.xlane.xlu0 %1055
        %v1057 = vsub.f32 %v963, %v1026
        %v1058 = vsub.f32 %v966, %v1028
        %v1059 = vsub.f32 %v971, %v1030
        %v1060 = vsub.f32 %v974, %v1032
        %v1061 = vsub.f32 %v979, %v1034
        %v1062 = vsub.f32 %v982, %v1036
        %v1063 = vsub.f32 %v987, %v1038
        %v1064 = vsub.f32 %v990, %v1040
        %v1065 = vsub.f32 %v995, %v1042
        %v1066 = vsub.f32 %v998, %v1044
        %v1067 = vsub.f32 %v1003, %v1046
        %v1068 = vsub.f32 %v1006, %v1048
        %v1069 = vsub.f32 %v1011, %v1050
        %v1070 = vsub.f32 %v1014, %v1052
        %v1071 = vsub.f32 %v1019, %v1054
        %v1072 = vsub.f32 %v1022, %v1056
        %v1073 = vmul.f32 %v1057, 1.442695
        %v1074 = vpow.pop %v1073
        %v1075 = vmul.f32 %v1058, 1.442695
        %v1076 = vpow.pop %v1075
        %v1077 = vmul.f32 %v1059, 1.442695
        %v1078 = vpow.pop %v1077
        %v1079 = vmul.f32 %v1060, 1.442695
        %v1080 = vpow.pop %v1079
        %v1081 = vmul.f32 %v1061, 1.442695
        %v1082 = vpow.pop %v1081
        %v1083 = vmul.f32 %v1062, 1.442695
        %v1084 = vpow.pop %v1083
        %v1085 = vmul.f32 %v1063, 1.442695
        %v1086 = vpow.pop %v1085
        %v1087 = vmul.f32 %v1064, 1.442695
        %v1088 = vpow.pop %v1087
        %v1089 = vmul.f32 %v1065, 1.442695
        %v1090 = vpow.pop %v1089
        %v1091 = vmul.f32 %v1066, 1.442695
        %v1092 = vpow.pop %v1091
        %v1093 = vmul.f32 %v1067, 1.442695
        %v1094 = vpow.pop %v1093
        %v1095 = vmul.f32 %v1068, 1.442695
        %v1096 = vpow.pop %v1095
        %v1097 = vmul.f32 %v1069, 1.442695
        %v1098 = vpow.pop %v1097
        %v1099 = vmul.f32 %v1070, 1.442695
        %v1100 = vpow.pop %v1099
        %v1101 = vmul.f32 %v1071, 1.442695
        %v1102 = vpow.pop %v1101
        %v1103 = vmul.f32 %v1072, 1.442695
        %v1104 = vpow.pop %v1103
        %1105 = vadd.xlane.f32.xlu0 %v1074
        %v1106 = vpop.xlane.xlu0 %1105
        %1107 = vadd.xlane.f32.xlu0 %v1076
        %v1108 = vpop.xlane.xlu0 %1107
        %1109 = vadd.xlane.f32.xlu0 %v1078
        %v1110 = vpop.xlane.xlu0 %1109
        %1111 = vadd.xlane.f32.xlu0 %v1080
        %v1112 = vpop.xlane.xlu0 %1111
        %1113 = vadd.xlane.f32.xlu0 %v1082
        %v1114 = vpop.xlane.xlu0 %1113
        %1115 = vadd.xlane.f32.xlu0 %v1084
        %v1116 = vpop.xlane.xlu0 %1115
        %1117 = vadd.xlane.f32.xlu0 %v1086
        %v1118 = vpop.xlane.xlu0 %1117
        %1119 = vadd.xlane.f32.xlu0 %v1088
        %v1120 = vpop.xlane.xlu0 %1119
        %1121 = vadd.xlane.f32.xlu0 %v1090
        %v1122 = vpop.xlane.xlu0 %1121
        %1123 = vadd.xlane.f32.xlu0 %v1092
        %v1124 = vpop.xlane.xlu0 %1123
        %1125 = vadd.xlane.f32.xlu0 %v1094
        %v1126 = vpop.xlane.xlu0 %1125
        %1127 = vadd.xlane.f32.xlu0 %v1096
        %v1128 = vpop.xlane.xlu0 %1127
        %1129 = vadd.xlane.f32.xlu0 %v1098
        %v1130 = vpop.xlane.xlu0 %1129
        %1131 = vadd.xlane.f32.xlu0 %v1100
        %v1132 = vpop.xlane.xlu0 %1131
        %1133 = vadd.xlane.f32.xlu0 %v1102
        %v1134 = vpop.xlane.xlu0 %1133
        %1135 = vadd.xlane.f32.xlu0 %v1104
        %v1136 = vpop.xlane.xlu0 %1135
        %v1137 = vrcp.pop %v1106
        %v1138 = vmul.f32 %v1074, %v1137
        %v1139 = vrcp.pop %v1108
        %v1140 = vmul.f32 %v1076, %v1139
        %v1141 = vrcp.pop %v1110
        %v1142 = vmul.f32 %v1078, %v1141
        %v1143 = vrcp.pop %v1112
        %v1144 = vmul.f32 %v1080, %v1143
        %v1145 = vrcp.pop %v1114
        %v1146 = vmul.f32 %v1082, %v1145
        %v1147 = vrcp.pop %v1116
        %v1148 = vmul.f32 %v1084, %v1147
        %v1149 = vrcp.pop %v1118
        %v1150 = vmul.f32 %v1086, %v1149
        %v1151 = vrcp.pop %v1120
        %v1152 = vmul.f32 %v1088, %v1151
        %v1153 = vrcp.pop %v1122
        %v1154 = vmul.f32 %v1090, %v1153
        %v1155 = vrcp.pop %v1124
        %v1156 = vmul.f32 %v1092, %v1155
        %v1157 = vrcp.pop %v1126
        %v1158 = vmul.f32 %v1094, %v1157
        %v1159 = vrcp.pop %v1128
        %v1160 = vmul.f32 %v1096, %v1159
        %v1161 = vrcp.pop %v1130
        %v1162 = vmul.f32 %v1098, %v1161
        %v1163 = vrcp.pop %v1132
        %v1164 = vmul.f32 %v1100, %v1163
        %v1165 = vrcp.pop %v1134
        %v1166 = vmul.f32 %v1102, %v1165
        %v1167 = vrcp.pop %v1136
        %v1168 = vmul.f32 %v1104, %v1167
        %1169 = vst [vmem:[%s348] sm:$0xff] %v1138
        %1170 = vst [vmem:[%s348 + $0x8] sm:$0xff] %v1140
        %1171 = vst [vmem:[%s348 + $0x10] sm:$0xff] %v1142
        %1172 = vst [vmem:[%s348 + $0x18] sm:$0xff] %v1144
        %1173 = vst [vmem:[%s348 + $0x20] sm:$0xff] %v1146
        %1174 = vst [vmem:[%s348 + $0x28] sm:$0xff] %v1148
        %1175 = vst [vmem:[%s348 + $0x30] sm:$0xff] %v1150
        %1176 = vst [vmem:[%s348 + $0x38] sm:$0xff] %v1152
        %1177 = vst [vmem:[%s348 + $0x40] sm:$0xff] %v1154
        %1178 = vst [vmem:[%s348 + $0x48] sm:$0xff] %v1156
        %1179 = vst [vmem:[%s348 + $0x50] sm:$0xff] %v1158
        %1180 = vst [vmem:[%s348 + $0x58] sm:$0xff] %v1160
        %1181 = vst [vmem:[%s348 + $0x60] sm:$0xff] %v1162
        %1182 = vst [vmem:[%s348 + $0x68] sm:$0xff] %v1164
        %1183 = vst [vmem:[%s348 + $0x70] sm:$0xff] %v1166
        %1184 = vst [vmem:[%s348 + $0x78] sm:$0xff] %v1168
        %s1185 = sand.u32 %s186, 1
        %s1186 = scalar_lea.sflag [#allocation4], %s1185
        %s1187 = sand.u32 %s186, 1
        %s1188 = smul.addr %s1187, 128
        %s1189 = scalar_lea.vmem [#allocation10], %s1188
        // Predicated region
        $region65: #{tpu_custom_call.1} parent=47 // pred_check
          %p1190 = pneg %p196
        $region66: #{tpu_custom_call.1} parent=47 // pred_check_branch
          %1192 = sbr.rel (%p1190) target = $region68
        $region67: #{tpu_custom_call.1} parent=47 // pred_region
          %s1193 = smul.u32 16, %s26
          %s1194 = ssub.s32 63, %s1193
          %p1195 = scmp.lt.s32.totalorder %s1194, 16
          %s1196 = scalar_select %p1195, %s1194, 16
          %s1197 = smul.u32 128, %s1196
          %s1199 = ssub.s32 2048, %s1197
          %1200 = vsyncadd %s1186, %s1199
          %p1201 = scmp.ne.s32.totalorder 0, %s1197
          %s1202 = smul.addr %s1193, 128
          %s1203 = scalar_lea.hbm %s7, %s1202
          %s1204 = smul.u32 8, %s1196
          %s1205 = sshll.u32 %s1189, 4
          %s1206 = int_to_ptr.vmem [resolvable:$true] %s1205
          %s1207 = sshll.u32 %s1204, 4
          %1211 = dma.vmem_to_hbm [thread:$0]  (%p1201), %s1206, %s1207, %s1203, %s1186, 128, 128, 8
        $region68: #{tpu_custom_call.1} parent=47 // pred_fallthru
          _
      $region48: #{tpu_custom_call.1} parent=5 // pred_fallthru
        _
      %p1212 = scmp.le.s32.totalorder 2, %s21
      // Predicated region
      $region69: #{tpu_custom_call.1} parent=5 // pred_check
        %p1213 = pneg %p1212
      $region70: #{tpu_custom_call.1} parent=5 // pred_check_branch
        %1215 = sbr.rel (%p1213) target = $region72
      $region71: #{tpu_custom_call.1} parent=5 // pred_region
        %s1216 = ssub.s32 %s21, 2
        // Predicated region
        $region73: #{tpu_custom_call.1} parent=71 // pred_check
          %p1217 = pneg %p202
        $region74: #{tpu_custom_call.1} parent=71 // pred_check_branch
          %1219 = sbr.rel (%p1217) target = $region76
        $region75: #{tpu_custom_call.1} parent=71 // pred_region
          %s1220 = sand.u32 %s187, 1
          %s1221 = scalar_lea.sflag [#allocation4], %s1220
          %s1222 = sand.u32 %s187, 1
          %s1223 = smul.addr %s1222, 128
          %s1224 = scalar_lea.vmem [#allocation10], %s1223
          %1225 = dma.done %s1221, 2048
        $region76: #{tpu_custom_call.1} parent=71 // pred_fallthru
          _
      $region72: #{tpu_custom_call.1} parent=5 // pred_fallthru
        _
    $region6: #{tpu_custom_call.1} parent=1 // loop_footer
      %s25 = sadd.s32 1, %s21
    $region7: #{tpu_custom_call.1} parent=1 // loop_footer_branch
      %20 = sbr.rel target = $region3
    $region8: #{tpu_custom_call.1} parent=1 // loop_exit
      _
    %1226 = vsyncpa [#allocation3], 1
    %s1227 = scalar_lea.sflag [#allocation3], 1
    %1228 = vsyncpa %s1227, 1
    %1229 = vsyncpa [#allocation6], 1
    %1230 = vsyncpa [#allocation9], 1
    %1231 = vsyncpa [#allocation4], 1
    %s1232 = scalar_lea.sflag [#allocation4], 1
    %1233 = vsyncpa %s1232, 1

</llo_original>
